<compile_context>
chip_gen: v7x
topology: tpu7x:2x2x1
jax: 0.10.0
libtpu: 0.0.40
codegen_flags: <defaults>
</compile_context>

<pallas_src>
import functools

import jax
import jax.numpy as jnp
from jax.experimental import pallas as pl
from jax.experimental.pallas import tpu as pltpu


def _round_up(x, m):
    return ((x + m - 1) // m) * m


# ------------------------------ fused kernel --------------------------------


def _encoder_kernel(prot_ref, fcw_ref, fcb_ref, cw_ref, cb_ref, lng_ref,
                    lnb_ref, o_ref, xpad_ref, *, L, H, K, n_layers, start):
    """One batch element, fully fused encoder.

    prot_ref : [1, L, P]            input protein features
    fcw_ref  : [P, H], fcb_ref [1, H]
    cw_ref   : [n_layers, K, H, 2H] conv weights, tap-major (w[l,k] == torch_w[:, :, k].T)
    cb_ref   : [n_layers, 1, 2H]
    lng_ref  : [1, H], lnb_ref [1, H]
    o_ref    : [1, L, H]
    xpad_ref : VMEM scratch [start + L + start, H] (zero-padded staging buffer)
    """
    pad = (K - 1) // 2
    scale = jnp.float32(0.7071067811865476)  # sqrt(0.5)

    # ---- fc: [L, P] @ [P, H] + b -------------------------------------------
    x = jnp.dot(prot_ref[0].astype(jnp.float32), fcw_ref[...],
                preferred_element_type=jnp.float32) + fcb_ref[...]

    # ---- padded staging buffer: zero ONLY the edge rows (they stay zero) -----
    xpad_ref[0:start, :] = jnp.zeros((start, H), jnp.float32)
    xpad_ref[start + L:, :] = jnp.zeros((start, H), jnp.float32)
    xpad_ref[start:start + L, :] = x          # activation lives here all layers

    # ---- conv / GLU / residual stack, VMEM-resident across all layers -------
    for layer in range(n_layers):             # static unroll, n_layers is small
        xp = xpad_ref[...]                    # [start + L + start, H]
        residual = xp[start:start + L, :]

        acc = jnp.zeros((L, 2 * H), jnp.float32)
        for k in range(K):                    # static unroll, K is small
            s0 = start - pad + k
            acc = acc + jnp.dot(xp[s0:s0 + L, :], cw_ref[layer, k],
                                preferred_element_type=jnp.float32)
        acc = acc + cb_ref[layer]              # [1, 2H] broadcast

        a = acc[:, :H]
        gate = acc[:, H:]
        xpad_ref[start:start + L, :] = (
            a * jax.nn.sigmoid(gate) + residual) * scale

    # ---- LayerNorm over hid_dim ---------------------------------------------
    xf = xpad_ref[start:start + L, :]
    mean = jnp.mean(xf, axis=-1, keepdims=True)
    var = jnp.mean((xf - mean) ** 2, axis=-1, keepdims=True)
    y = (xf - mean) * jax.lax.rsqrt(var + jnp.float32(1e-5))
    o_ref[0] = (y * lng_ref[...] + lnb_ref[...]).astype(o_ref.dtype)


# ------------------------------- wrapper ------------------------------------


def encoder_forward(protein, params, kernel_size):
    """protein: [B, L, protein_dim] -> [B, L, hid_dim]."""
    B, L, P = protein.shape
    H = params["fc_w"].shape[1]
    K = kernel_size
    pad = (K - 1) // 2
    n_layers = params["conv_w"].shape[0]

    # Sublane-aligned row offset for the activation inside the padded scratch.
    start = _round_up(max(pad, 1), 8)
    Lp = start + L + start

    kern = functools.partial(_encoder_kernel, L=L, H=H, K=K,
                             n_layers=n_layers, start=start)

    return pl.pallas_call(
        kern,
        out_shape=jax.ShapeDtypeStruct((B, L, H), protein.dtype),
        grid=(B,),
        in_specs=[
            pl.BlockSpec((1, L, P), lambda b: (b, 0, 0)),           # protein
            pl.BlockSpec((P, H), lambda b: (0, 0)),                 # fc weight
            pl.BlockSpec((1, H), lambda b: (0, 0)),                 # fc bias
            pl.BlockSpec((n_layers, K, H, 2 * H),
                         lambda b: (0, 0, 0, 0)),                   # conv weights
            pl.BlockSpec((n_layers, 1, 2 * H), lambda b: (0, 0, 0)),  # conv biases
            pl.BlockSpec((1, H), lambda b: (0, 0)),                 # ln gamma
            pl.BlockSpec((1, H), lambda b: (0, 0)),                 # ln beta
        ],
        out_specs=pl.BlockSpec((1, L, H), lambda b: (b, 0, 0)),
        scratch_shapes=[pltpu.VMEM((Lp, H), jnp.float32)],
        compiler_params=pltpu.CompilerParams(
            dimension_semantics=("parallel",),      # shard batches over cores
            vmem_limit_bytes=32 * 1024 * 1024,      # safe on v5e/v6e/v7x
        ),
    )(protein, params["fc_w"], params["fc_b"], params["conv_w"],
      params["conv_b"], params["ln_g"], params["ln_b"])


# --------------------------- pure-JAX reference -----------------------------


def encoder_ref(protein, params, kernel_size):
    B, L, _ = protein.shape
    H = params["fc_w"].shape[1]
    K = kernel_size
    pad = (K - 1) // 2
    n_layers = params["conv_w"].shape[0]

    x = protein @ params["fc_w"] + params["fc_b"][0]
    scale = jnp.sqrt(jnp.float32(0.5))
    for l in range(n_layers):
        xp = jnp.pad(x, ((0, 0), (pad, pad), (0, 0)))
        conved = jnp.zeros((B, L, 2 * H), jnp.float32) + params["conv_b"][l][0]
        for k in range(K):
            conved = conved + jnp.einsum("blh,ho->blo", xp[:, k:k + L],
                                         params["conv_w"][l, k])
        a, g = conved[..., :H], conved[..., H:]
        x = (a * jax.nn.sigmoid(g) + x) * scale
    mean = x.mean(-1, keepdims=True)
    var = ((x - mean) ** 2).mean(-1, keepdims=True)
    y = (x - mean) / jnp.sqrt(var + 1e-5)
    return y * params["ln_g"][0] + params["ln_b"][0]


# ------------------------------- main ---------------------------------------


if __name__ == "__main__":
    # Small shapes consistent with the module.
    B, L = 2, 16
    protein_dim, hid_dim = 32, 32
    n_layers, kernel_size = 3, 3

    key = jax.random.PRNGKey(0)
    keys = jax.random.split(key, 6)

    params = {
        # torch Linear weight is [out, in]; stored pre-transposed [in, out]
        "fc_w": 0.1 * jax.random.normal(keys[0], (protein_dim, hid_dim),
                                        jnp.float32),
        "fc_b": 0.1 * jax.random.normal(keys[1], (1, hid_dim), jnp.float32),
        # torch Conv1d weight is [2H, H, K]; stored tap-major [n_layers, K, H, 2H]
        "conv_w": 0.1 * jax.random.normal(
            keys[2], (n_layers, kernel_size, hid_dim, 2 * hid_dim), jnp.float32),
        "conv_b": 0.1 * jax.random.normal(
            keys[3], (n_layers, 1, 2 * hid_dim), jnp.float32),
        "ln_g": jnp.ones((1, hid_dim), jnp.float32),
        "ln_b": jnp.zeros((1, hid_dim), jnp.float32),
    }

    protein = jax.random.normal(keys[4], (B, L, protein_dim), jnp.float32)

    out = encoder_forward(protein, params, kernel_size)
    out = jax.block_until_ready(out)

    ref = encoder_ref(protein, params, kernel_size)
    assert out.shape == (B, L, hid_dim)
    assert jnp.allclose(out, ref, atol=1e-4, rtol=1e-4), (
        f"max abs err {jnp.max(jnp.abs(out - ref))}"
    )

    print("KERNEL_OK")
</pallas_src>

<mosaic_0001>
module attributes {stable_mosaic.version = 11 : i64} {
  func.func @_encoder_kernel(%arg0: i32, %arg1: memref<1x16x32xf32, #tpu.memory_space<vmem>>, %arg2: memref<32x32xf32, #tpu.memory_space<vmem>>, %arg3: memref<1x32xf32, #tpu.memory_space<vmem>>, %arg4: memref<3x3x32x64xf32, #tpu.memory_space<vmem>>, %arg5: memref<3x1x64xf32, #tpu.memory_space<vmem>>, %arg6: memref<1x32xf32, #tpu.memory_space<vmem>>, %arg7: memref<1x32xf32, #tpu.memory_space<vmem>>, %arg8: memref<1x16x32xf32, #tpu.memory_space<vmem>>, %arg9: memref<32x32xf32, #tpu.memory_space<vmem>>) attributes {dimension_semantics = [#tpu.dimension_semantics<parallel>], iteration_bounds = array<i64: 2>, scalar_prefetch = 0 : i64, scratch_operands = 1 : i64, tpu.core_type = #tpu.core_type<tc>, window_params = [{transform_indices = @transform_0, window_bounds = array<i64: 1, 16, 32>}, {pipeline_mode = #tpu.pipeline_mode<synchronous>, transform_indices = @transform_1, window_bounds = array<i64: 32, 32>}, {pipeline_mode = #tpu.pipeline_mode<synchronous>, transform_indices = @transform_2, window_bounds = array<i64: 1, 32>}, {pipeline_mode = #tpu.pipeline_mode<synchronous>, transform_indices = @transform_3, window_bounds = array<i64: 3, 3, 32, 64>}, {pipeline_mode = #tpu.pipeline_mode<synchronous>, transform_indices = @transform_4, window_bounds = array<i64: 3, 1, 64>}, {pipeline_mode = #tpu.pipeline_mode<synchronous>, transform_indices = @transform_5, window_bounds = array<i64: 1, 32>}, {pipeline_mode = #tpu.pipeline_mode<synchronous>, transform_indices = @transform_6, window_bounds = array<i64: 1, 32>}, {transform_indices = @transform_7, window_bounds = array<i64: 1, 16, 32>}]} {
    %c0 = arith.constant 0 : index
    %c0_0 = arith.constant 0 : index
    %c0_1 = arith.constant 0 : index
    %0 = vector.load %arg1[%c0, %c0_0, %c0_1] : memref<1x16x32xf32, #tpu.memory_space<vmem>>, vector<1x16x32xf32>
    %1 = vector.shape_cast %0 : vector<1x16x32xf32> to vector<16x32xf32>
    %c0_2 = arith.constant 0 : index
    %c0_3 = arith.constant 0 : index
    %2 = vector.load %arg2[%c0_2, %c0_3] : memref<32x32xf32, #tpu.memory_space<vmem>>, vector<32x32xf32>
    %cst = arith.constant dense<0.000000e+00> : vector<16x32xf32>
    %3 = tpu.matmul %1, %2, %cst {dimension_numbers = #tpu.dot_dimension_numbers<[1], [0], [0], [1], [0, 0, 1, 1], [], []>} : vector<16x32xf32>, vector<32x32xf32>, vector<16x32xf32> -> vector<16x32xf32>
    %c0_4 = arith.constant 0 : index
    %c0_5 = arith.constant 0 : index
    %4 = vector.load %arg3[%c0_4, %c0_5] : memref<1x32xf32, #tpu.memory_space<vmem>>, vector<1x32xf32>
    %5 = vector.broadcast %4 : vector<1x32xf32> to vector<16x32xf32>
    %6 = arith.addf %3, %5 : vector<16x32xf32>
    %cst_6 = arith.constant 0.000000e+00 : f32
    %7 = vector.broadcast %cst_6 : f32 to vector<8x32xf32>
    %c0_7 = arith.constant 0 : index
    %c0_8 = arith.constant 0 : index
    %8 = vector.load %arg9[%c0_7, %c0_8] : memref<32x32xf32, #tpu.memory_space<vmem>>, vector<8x32xf32>
    tpu.vector_store %arg9[%c0_7, %c0_8], %7 {strides = array<i32>} : memref<32x32xf32, #tpu.memory_space<vmem>>, vector<8x32xf32>,
    %cst_9 = arith.constant 0.000000e+00 : f32
    %9 = vector.broadcast %cst_9 : f32 to vector<8x32xf32>
    %c24 = arith.constant 24 : index
    %c0_10 = arith.constant 0 : index
    %10 = vector.load %arg9[%c24, %c0_10] : memref<32x32xf32, #tpu.memory_space<vmem>>, vector<8x32xf32>
    tpu.vector_store %arg9[%c24, %c0_10], %9 {strides = array<i32>} : memref<32x32xf32, #tpu.memory_space<vmem>>, vector<8x32xf32>,
    %c8 = arith.constant 8 : index
    %c0_11 = arith.constant 0 : index
    %11 = vector.load %arg9[%c8, %c0_11] : memref<32x32xf32, #tpu.memory_space<vmem>>, vector<16x32xf32>
    tpu.vector_store %arg9[%c8, %c0_11], %6 {strides = array<i32>} : memref<32x32xf32, #tpu.memory_space<vmem>>, vector<16x32xf32>,
    %c0_12 = arith.constant 0 : index
    %c0_13 = arith.constant 0 : index
    %12 = vector.load %arg9[%c0_12, %c0_13] : memref<32x32xf32, #tpu.memory_space<vmem>>, vector<32x32xf32>
    %13 = vector.extract_strided_slice %12 {offsets = [8, 0], sizes = [16, 32], strides = [1, 1]} : vector<32x32xf32> to vector<16x32xf32>
    %cst_14 = arith.constant 0.000000e+00 : f32
    %14 = vector.broadcast %cst_14 : f32 to vector<16x64xf32>
    %15 = vector.extract_strided_slice %12 {offsets = [7, 0], sizes = [16, 32], strides = [1, 1]} : vector<32x32xf32> to vector<16x32xf32>
    %c0_15 = arith.constant 0 : index
    %c0_16 = arith.constant 0 : index
    %c0_17 = arith.constant 0 : index
    %c0_18 = arith.constant 0 : index
    %16 = vector.load %arg4[%c0_15, %c0_16, %c0_17, %c0_18] : memref<3x3x32x64xf32, #tpu.memory_space<vmem>>, vector<1x1x32x64xf32>
    %17 = vector.shape_cast %16 : vector<1x1x32x64xf32> to vector<32x64xf32>
    %cst_19 = arith.constant dense<0.000000e+00> : vector<16x64xf32>
    %18 = tpu.matmul %15, %17, %cst_19 {dimension_numbers = #tpu.dot_dimension_numbers<[1], [0], [0], [1], [0, 0, 1, 1], [], []>} : vector<16x32xf32>, vector<32x64xf32>, vector<16x64xf32> -> vector<16x64xf32>
    %19 = arith.addf %14, %18 : vector<16x64xf32>
    %20 = vector.extract_strided_slice %12 {offsets = [8, 0], sizes = [16, 32], strides = [1, 1]} : vector<32x32xf32> to vector<16x32xf32>
    %c0_20 = arith.constant 0 : index
    %c1 = arith.constant 1 : index
    %c0_21 = arith.constant 0 : index
    %c0_22 = arith.constant 0 : index
    %21 = vector.load %arg4[%c0_20, %c1, %c0_21, %c0_22] : memref<3x3x32x64xf32, #tpu.memory_space<vmem>>, vector<1x1x32x64xf32>
    %22 = vector.shape_cast %21 : vector<1x1x32x64xf32> to vector<32x64xf32>
    %cst_23 = arith.constant dense<0.000000e+00> : vector<16x64xf32>
    %23 = tpu.matmul %20, %22, %cst_23 {dimension_numbers = #tpu.dot_dimension_numbers<[1], [0], [0], [1], [0, 0, 1, 1], [], []>} : vector<16x32xf32>, vector<32x64xf32>, vector<16x64xf32> -> vector<16x64xf32>
    %24 = arith.addf %19, %23 : vector<16x64xf32>
    %25 = vector.extract_strided_slice %12 {offsets = [9, 0], sizes = [16, 32], strides = [1, 1]} : vector<32x32xf32> to vector<16x32xf32>
    %c0_24 = arith.constant 0 : index
    %c2 = arith.constant 2 : index
    %c0_25 = arith.constant 0 : index
    %c0_26 = arith.constant 0 : index
    %26 = vector.load %arg4[%c0_24, %c2, %c0_25, %c0_26] : memref<3x3x32x64xf32, #tpu.memory_space<vmem>>, vector<1x1x32x64xf32>
    %27 = vector.shape_cast %26 : vector<1x1x32x64xf32> to vector<32x64xf32>
    %cst_27 = arith.constant dense<0.000000e+00> : vector<16x64xf32>
    %28 = tpu.matmul %25, %27, %cst_27 {dimension_numbers = #tpu.dot_dimension_numbers<[1], [0], [0], [1], [0, 0, 1, 1], [], []>} : vector<16x32xf32>, vector<32x64xf32>, vector<16x64xf32> -> vector<16x64xf32>
    %29 = arith.addf %24, %28 : vector<16x64xf32>
    %c0_28 = arith.constant 0 : index
    %c0_29 = arith.constant 0 : index
    %c0_30 = arith.constant 0 : index
    %30 = vector.load %arg5[%c0_28, %c0_29, %c0_30] : memref<3x1x64xf32, #tpu.memory_space<vmem>>, vector<1x1x64xf32>
    %31 = vector.shape_cast %30 : vector<1x1x64xf32> to vector<1x64xf32>
    %32 = vector.broadcast %31 : vector<1x64xf32> to vector<16x64xf32>
    %33 = arith.addf %29, %32 : vector<16x64xf32>
    %34 = vector.extract_strided_slice %33 {offsets = [0, 0], sizes = [16, 32], strides = [1, 1]} : vector<16x64xf32> to vector<16x32xf32>
    %35 = vector.extract_strided_slice %33 {offsets = [0, 32], sizes = [16, 32], strides = [1, 1]} : vector<16x64xf32> to vector<16x32xf32>
    %36 = arith.negf %35 : vector<16x32xf32>
    %37 = math.exp %36 : vector<16x32xf32>
    %cst_31 = arith.constant 1.000000e+00 : f32
    %38 = vector.broadcast %cst_31 : f32 to vector<16x32xf32>
    %39 = arith.addf %38, %37 : vector<16x32xf32>
    %40 = arith.divf %38, %39 : vector<16x32xf32>
    %41 = arith.mulf %34, %40 : vector<16x32xf32>
    %42 = arith.addf %41, %13 : vector<16x32xf32>
    %cst_32 = arith.constant 0.707106769 : f32
    %43 = vector.broadcast %cst_32 : f32 to vector<16x32xf32>
    %44 = arith.mulf %42, %43 : vector<16x32xf32>
    %c8_33 = arith.constant 8 : index
    %c0_34 = arith.constant 0 : index
    %45 = vector.load %arg9[%c8_33, %c0_34] : memref<32x32xf32, #tpu.memory_space<vmem>>, vector<16x32xf32>
    tpu.vector_store %arg9[%c8_33, %c0_34], %44 {strides = array<i32>} : memref<32x32xf32, #tpu.memory_space<vmem>>, vector<16x32xf32>,
    %c0_35 = arith.constant 0 : index
    %c0_36 = arith.constant 0 : index
    %46 = vector.load %arg9[%c0_35, %c0_36] : memref<32x32xf32, #tpu.memory_space<vmem>>, vector<32x32xf32>
    %47 = vector.extract_strided_slice %46 {offsets = [8, 0], sizes = [16, 32], strides = [1, 1]} : vector<32x32xf32> to vector<16x32xf32>
    %cst_37 = arith.constant 0.000000e+00 : f32
    %48 = vector.broadcast %cst_37 : f32 to vector<16x64xf32>
    %49 = vector.extract_strided_slice %46 {offsets = [7, 0], sizes = [16, 32], strides = [1, 1]} : vector<32x32xf32> to vector<16x32xf32>
    %c1_38 = arith.constant 1 : index
    %c0_39 = arith.constant 0 : index
    %c0_40 = arith.constant 0 : index
    %c0_41 = arith.constant 0 : index
    %50 = vector.load %arg4[%c1_38, %c0_39, %c0_40, %c0_41] : memref<3x3x32x64xf32, #tpu.memory_space<vmem>>, vector<1x1x32x64xf32>
    %51 = vector.shape_cast %50 : vector<1x1x32x64xf32> to vector<32x64xf32>
    %cst_42 = arith.constant dense<0.000000e+00> : vector<16x64xf32>
    %52 = tpu.matmul %49, %51, %cst_42 {dimension_numbers = #tpu.dot_dimension_numbers<[1], [0], [0], [1], [0, 0, 1, 1], [], []>} : vector<16x32xf32>, vector<32x64xf32>, vector<16x64xf32> -> vector<16x64xf32>
    %53 = arith.addf %48, %52 : vector<16x64xf32>
    %54 = vector.extract_strided_slice %46 {offsets = [8, 0], sizes = [16, 32], strides = [1, 1]} : vector<32x32xf32> to vector<16x32xf32>
    %c1_43 = arith.constant 1 : index
    %c1_44 = arith.constant 1 : index
    %c0_45 = arith.constant 0 : index
    %c0_46 = arith.constant 0 : index
    %55 = vector.load %arg4[%c1_43, %c1_44, %c0_45, %c0_46] : memref<3x3x32x64xf32, #tpu.memory_space<vmem>>, vector<1x1x32x64xf32>
    %56 = vector.shape_cast %55 : vector<1x1x32x64xf32> to vector<32x64xf32>
    %cst_47 = arith.constant dense<0.000000e+00> : vector<16x64xf32>
    %57 = tpu.matmul %54, %56, %cst_47 {dimension_numbers = #tpu.dot_dimension_numbers<[1], [0], [0], [1], [0, 0, 1, 1], [], []>} : vector<16x32xf32>, vector<32x64xf32>, vector<16x64xf32> -> vector<16x64xf32>
    %58 = arith.addf %53, %57 : vector<16x64xf32>
    %59 = vector.extract_strided_slice %46 {offsets = [9, 0], sizes = [16, 32], strides = [1, 1]} : vector<32x32xf32> to vector<16x32xf32>
    %c1_48 = arith.constant 1 : index
    %c2_49 = arith.constant 2 : index
    %c0_50 = arith.constant 0 : index
    %c0_51 = arith.constant 0 : index
    %60 = vector.load %arg4[%c1_48, %c2_49, %c0_50, %c0_51] : memref<3x3x32x64xf32, #tpu.memory_space<vmem>>, vector<1x1x32x64xf32>
    %61 = vector.shape_cast %60 : vector<1x1x32x64xf32> to vector<32x64xf32>
    %cst_52 = arith.constant dense<0.000000e+00> : vector<16x64xf32>
    %62 = tpu.matmul %59, %61, %cst_52 {dimension_numbers = #tpu.dot_dimension_numbers<[1], [0], [0], [1], [0, 0, 1, 1], [], []>} : vector<16x32xf32>, vector<32x64xf32>, vector<16x64xf32> -> vector<16x64xf32>
    %63 = arith.addf %58, %62 : vector<16x64xf32>
    %c1_53 = arith.constant 1 : index
    %c0_54 = arith.constant 0 : index
    %c0_55 = arith.constant 0 : index
    %64 = vector.load %arg5[%c1_53, %c0_54, %c0_55] : memref<3x1x64xf32, #tpu.memory_space<vmem>>, vector<1x1x64xf32>
    %65 = vector.shape_cast %64 : vector<1x1x64xf32> to vector<1x64xf32>
    %66 = vector.broadcast %65 : vector<1x64xf32> to vector<16x64xf32>
    %67 = arith.addf %63, %66 : vector<16x64xf32>
    %68 = vector.extract_strided_slice %67 {offsets = [0, 0], sizes = [16, 32], strides = [1, 1]} : vector<16x64xf32> to vector<16x32xf32>
    %69 = vector.extract_strided_slice %67 {offsets = [0, 32], sizes = [16, 32], strides = [1, 1]} : vector<16x64xf32> to vector<16x32xf32>
    %70 = arith.negf %69 : vector<16x32xf32>
    %71 = math.exp %70 : vector<16x32xf32>
    %cst_56 = arith.constant 1.000000e+00 : f32
    %72 = vector.broadcast %cst_56 : f32 to vector<16x32xf32>
    %73 = arith.addf %72, %71 : vector<16x32xf32>
    %74 = arith.divf %72, %73 : vector<16x32xf32>
    %75 = arith.mulf %68, %74 : vector<16x32xf32>
    %76 = arith.addf %75, %47 : vector<16x32xf32>
    %cst_57 = arith.constant 0.707106769 : f32
    %77 = vector.broadcast %cst_57 : f32 to vector<16x32xf32>
    %78 = arith.mulf %76, %77 : vector<16x32xf32>
    %c8_58 = arith.constant 8 : index
    %c0_59 = arith.constant 0 : index
    %79 = vector.load %arg9[%c8_58, %c0_59] : memref<32x32xf32, #tpu.memory_space<vmem>>, vector<16x32xf32>
    tpu.vector_store %arg9[%c8_58, %c0_59], %78 {strides = array<i32>} : memref<32x32xf32, #tpu.memory_space<vmem>>, vector<16x32xf32>,
    %c0_60 = arith.constant 0 : index
    %c0_61 = arith.constant 0 : index
    %80 = vector.load %arg9[%c0_60, %c0_61] : memref<32x32xf32, #tpu.memory_space<vmem>>, vector<32x32xf32>
    %81 = vector.extract_strided_slice %80 {offsets = [8, 0], sizes = [16, 32], strides = [1, 1]} : vector<32x32xf32> to vector<16x32xf32>
    %cst_62 = arith.constant 0.000000e+00 : f32
    %82 = vector.broadcast %cst_62 : f32 to vector<16x64xf32>
    %83 = vector.extract_strided_slice %80 {offsets = [7, 0], sizes = [16, 32], strides = [1, 1]} : vector<32x32xf32> to vector<16x32xf32>
    %c2_63 = arith.constant 2 : index
    %c0_64 = arith.constant 0 : index
    %c0_65 = arith.constant 0 : index
    %c0_66 = arith.constant 0 : index
    %84 = vector.load %arg4[%c2_63, %c0_64, %c0_65, %c0_66] : memref<3x3x32x64xf32, #tpu.memory_space<vmem>>, vector<1x1x32x64xf32>
    %85 = vector.shape_cast %84 : vector<1x1x32x64xf32> to vector<32x64xf32>
    %cst_67 = arith.constant dense<0.000000e+00> : vector<16x64xf32>
    %86 = tpu.matmul %83, %85, %cst_67 {dimension_numbers = #tpu.dot_dimension_numbers<[1], [0], [0], [1], [0, 0, 1, 1], [], []>} : vector<16x32xf32>, vector<32x64xf32>, vector<16x64xf32> -> vector<16x64xf32>
    %87 = arith.addf %82, %86 : vector<16x64xf32>
    %88 = vector.extract_strided_slice %80 {offsets = [8, 0], sizes = [16, 32], strides = [1, 1]} : vector<32x32xf32> to vector<16x32xf32>
    %c2_68 = arith.constant 2 : index
    %c1_69 = arith.constant 1 : index
    %c0_70 = arith.constant 0 : index
    %c0_71 = arith.constant 0 : index
    %89 = vector.load %arg4[%c2_68, %c1_69, %c0_70, %c0_71] : memref<3x3x32x64xf32, #tpu.memory_space<vmem>>, vector<1x1x32x64xf32>
    %90 = vector.shape_cast %89 : vector<1x1x32x64xf32> to vector<32x64xf32>
    %cst_72 = arith.constant dense<0.000000e+00> : vector<16x64xf32>
    %91 = tpu.matmul %88, %90, %cst_72 {dimension_numbers = #tpu.dot_dimension_numbers<[1], [0], [0], [1], [0, 0, 1, 1], [], []>} : vector<16x32xf32>, vector<32x64xf32>, vector<16x64xf32> -> vector<16x64xf32>
    %92 = arith.addf %87, %91 : vector<16x64xf32>
    %93 = vector.extract_strided_slice %80 {offsets = [9, 0], sizes = [16, 32], strides = [1, 1]} : vector<32x32xf32> to vector<16x32xf32>
    %c2_73 = arith.constant 2 : index
    %c2_74 = arith.constant 2 : index
    %c0_75 = arith.constant 0 : index
    %c0_76 = arith.constant 0 : index
    %94 = vector.load %arg4[%c2_73, %c2_74, %c0_75, %c0_76] : memref<3x3x32x64xf32, #tpu.memory_space<vmem>>, vector<1x1x32x64xf32>
    %95 = vector.shape_cast %94 : vector<1x1x32x64xf32> to vector<32x64xf32>
    %cst_77 = arith.constant dense<0.000000e+00> : vector<16x64xf32>
    %96 = tpu.matmul %93, %95, %cst_77 {dimension_numbers = #tpu.dot_dimension_numbers<[1], [0], [0], [1], [0, 0, 1, 1], [], []>} : vector<16x32xf32>, vector<32x64xf32>, vector<16x64xf32> -> vector<16x64xf32>
    %97 = arith.addf %92, %96 : vector<16x64xf32>
    %c2_78 = arith.constant 2 : index
    %c0_79 = arith.constant 0 : index
    %c0_80 = arith.constant 0 : index
    %98 = vector.load %arg5[%c2_78, %c0_79, %c0_80] : memref<3x1x64xf32, #tpu.memory_space<vmem>>, vector<1x1x64xf32>
    %99 = vector.shape_cast %98 : vector<1x1x64xf32> to vector<1x64xf32>
    %100 = vector.broadcast %99 : vector<1x64xf32> to vector<16x64xf32>
    %101 = arith.addf %97, %100 : vector<16x64xf32>
    %102 = vector.extract_strided_slice %101 {offsets = [0, 0], sizes = [16, 32], strides = [1, 1]} : vector<16x64xf32> to vector<16x32xf32>
    %103 = vector.extract_strided_slice %101 {offsets = [0, 32], sizes = [16, 32], strides = [1, 1]} : vector<16x64xf32> to vector<16x32xf32>
    %104 = arith.negf %103 : vector<16x32xf32>
    %105 = math.exp %104 : vector<16x32xf32>
    %cst_81 = arith.constant 1.000000e+00 : f32
    %106 = vector.broadcast %cst_81 : f32 to vector<16x32xf32>
    %107 = arith.addf %106, %105 : vector<16x32xf32>
    %108 = arith.divf %106, %107 : vector<16x32xf32>
    %109 = arith.mulf %102, %108 : vector<16x32xf32>
    %110 = arith.addf %109, %81 : vector<16x32xf32>
    %cst_82 = arith.constant 0.707106769 : f32
    %111 = vector.broadcast %cst_82 : f32 to vector<16x32xf32>
    %112 = arith.mulf %110, %111 : vector<16x32xf32>
    %c8_83 = arith.constant 8 : index
    %c0_84 = arith.constant 0 : index
    %113 = vector.load %arg9[%c8_83, %c0_84] : memref<32x32xf32, #tpu.memory_space<vmem>>, vector<16x32xf32>
    tpu.vector_store %arg9[%c8_83, %c0_84], %112 {strides = array<i32>} : memref<32x32xf32, #tpu.memory_space<vmem>>, vector<16x32xf32>,
    %c8_85 = arith.constant 8 : index
    %c0_86 = arith.constant 0 : index
    %114 = vector.load %arg9[%c8_85, %c0_86] : memref<32x32xf32, #tpu.memory_space<vmem>>, vector<16x32xf32>
    %cst_87 = arith.constant dense<0.000000e+00> : vector<16xf32>
    %115 = vector.multi_reduction <add>, %114, %cst_87 [1] : vector<16x32xf32> to vector<16xf32>
    %116 = vector.shape_cast %115 : vector<16xf32> to vector<16x1xf32>
    %cst_88 = arith.constant 3.200000e+01 : f32
    %117 = vector.broadcast %cst_88 : f32 to vector<16x1xf32>
    %118 = arith.divf %116, %117 : vector<16x1xf32>
    %119 = vector.broadcast %118 : vector<16x1xf32> to vector<16x32xf32>
    %120 = arith.subf %114, %119 : vector<16x32xf32>
    %121 = arith.mulf %120, %120 : vector<16x32xf32>
    %cst_89 = arith.constant dense<0.000000e+00> : vector<16xf32>
    %122 = vector.multi_reduction <add>, %121, %cst_89 [1] : vector<16x32xf32> to vector<16xf32>
    %123 = vector.shape_cast %122 : vector<16xf32> to vector<16x1xf32>
    %cst_90 = arith.constant 3.200000e+01 : f32
    %124 = vector.broadcast %cst_90 : f32 to vector<16x1xf32>
    %125 = arith.divf %123, %124 : vector<16x1xf32>
    %126 = vector.broadcast %118 : vector<16x1xf32> to vector<16x32xf32>
    %127 = arith.subf %114, %126 : vector<16x32xf32>
    %cst_91 = arith.constant 9.99999974E-6 : f32
    %128 = vector.broadcast %cst_91 : f32 to vector<16x1xf32>
    %129 = arith.addf %125, %128 : vector<16x1xf32>
    %130 = math.rsqrt %129 : vector<16x1xf32>
    %131 = vector.broadcast %130 : vector<16x1xf32> to vector<16x32xf32>
    %132 = arith.mulf %127, %131 : vector<16x32xf32>
    %c0_92 = arith.constant 0 : index
    %c0_93 = arith.constant 0 : index
    %133 = vector.load %arg6[%c0_92, %c0_93] : memref<1x32xf32, #tpu.memory_space<vmem>>, vector<1x32xf32>
    %134 = vector.broadcast %133 : vector<1x32xf32> to vector<16x32xf32>
    %135 = arith.mulf %132, %134 : vector<16x32xf32>
    %c0_94 = arith.constant 0 : index
    %c0_95 = arith.constant 0 : index
    %136 = vector.load %arg7[%c0_94, %c0_95] : memref<1x32xf32, #tpu.memory_space<vmem>>, vector<1x32xf32>
    %137 = vector.broadcast %136 : vector<1x32xf32> to vector<16x32xf32>
    %138 = arith.addf %135, %137 : vector<16x32xf32>
    %c0_96 = arith.constant 0 : index
    %c0_97 = arith.constant 0 : index
    %c0_98 = arith.constant 0 : index
    %139 = vector.load %arg8[%c0_96, %c0_97, %c0_98] : memref<1x16x32xf32, #tpu.memory_space<vmem>>, vector<1x16x32xf32>
    %140 = vector.shape_cast %139 : vector<1x16x32xf32> to vector<16x32xf32>
    %141 = vector.shape_cast %138 : vector<16x32xf32> to vector<1x16x32xf32>
    tpu.vector_store %arg8[%c0_96, %c0_97, %c0_98], %141 {strides = array<i32>} : memref<1x16x32xf32, #tpu.memory_space<vmem>>, vector<1x16x32xf32>,
    return
  }
  func.func @transform_0(%arg0: i32) -> (i32, i32, i32) {
    %c0_i32 = arith.constant 0 : i32
    %c0_i32_0 = arith.constant 0 : i32
    %c0_i32_1 = arith.constant 0 : i32
    return %arg0, %c0_i32, %c0_i32_0 : i32, i32, i32
  }
  func.func @transform_1(%arg0: i32) -> (i32, i32) {
    %c0_i32 = arith.constant 0 : i32
    %c0_i32_0 = arith.constant 0 : i32
    %c0_i32_1 = arith.constant 0 : i32
    return %c0_i32, %c0_i32_0 : i32, i32
  }
  func.func @transform_2(%arg0: i32) -> (i32, i32) {
    %c0_i32 = arith.constant 0 : i32
    %c0_i32_0 = arith.constant 0 : i32
    %c0_i32_1 = arith.constant 0 : i32
    return %c0_i32, %c0_i32_0 : i32, i32
  }
  func.func @transform_3(%arg0: i32) -> (i32, i32, i32, i32) {
    %c0_i32 = arith.constant 0 : i32
    %c0_i32_0 = arith.constant 0 : i32
    %c0_i32_1 = arith.constant 0 : i32
    %c0_i32_2 = arith.constant 0 : i32
    %c0_i32_3 = arith.constant 0 : i32
    return %c0_i32, %c0_i32_0, %c0_i32_1, %c0_i32_2 : i32, i32, i32, i32
  }
  func.func @transform_4(%arg0: i32) -> (i32, i32, i32) {
    %c0_i32 = arith.constant 0 : i32
    %c0_i32_0 = arith.constant 0 : i32
    %c0_i32_1 = arith.constant 0 : i32
    %c0_i32_2 = arith.constant 0 : i32
    return %c0_i32, %c0_i32_0, %c0_i32_1 : i32, i32, i32
  }
  func.func @transform_5(%arg0: i32) -> (i32, i32) {
    %c0_i32 = arith.constant 0 : i32
    %c0_i32_0 = arith.constant 0 : i32
    %c0_i32_1 = arith.constant 0 : i32
    return %c0_i32, %c0_i32_0 : i32, i32
  }
  func.func @transform_6(%arg0: i32) -> (i32, i32) {
    %c0_i32 = arith.constant 0 : i32
    %c0_i32_0 = arith.constant 0 : i32
    %c0_i32_1 = arith.constant 0 : i32
    return %c0_i32, %c0_i32_0 : i32, i32
  }
  func.func @transform_7(%arg0: i32) -> (i32, i32, i32) {
    %c0_i32 = arith.constant 0 : i32
    %c0_i32_0 = arith.constant 0 : i32
    %c0_i32_1 = arith.constant 0 : i32
    return %arg0, %c0_i32, %c0_i32_0 : i32, i32, i32
  }
}

</mosaic_0001>

<llo_original>
// kernel: tpu_custom_call.1
$region0: #{tpu_custom_call.1}
  #allocation0 [shape = 'u32[]', space=smem, size = 0x4, offset = 0x4, fixed_abs, tag = 'smem constant byte address 0x4 - core index']
  #allocation1 [shape = 'u32[144,128]{1,0:T(1,128)}', space=vmem, size = 0x12000, scoped, tag = 'internal scratch']
  #allocation2 [shape = 'f32[32,32]{1,0:T(8,128)}', space=vmem, size = 0x4000, scoped, tag = 'scratch operand']
  %s0 = inlined_call_operand.hbm [shape: f32[2,16,32], index: 0, kind: input, shape index: {}]
  %s1 = inlined_call_operand.hbm [shape: f32[32,32], index: 1, kind: input, shape index: {}]
  %s2 = inlined_call_operand.vmem [shape: f32[1,32], index: 2, kind: input, shape index: {}]
  %s3 = inlined_call_operand.hbm [shape: f32[3,3,32,64], index: 3, kind: input, shape index: {}]
  %s4 = inlined_call_operand.vmem [shape: f32[3,1,64], index: 4, kind: input, shape index: {}]
  %s5 = inlined_call_operand.vmem [shape: f32[1,32], index: 5, kind: input, shape index: {}]
  %s6 = inlined_call_operand.vmem [shape: f32[1,32], index: 6, kind: input, shape index: {}]
  %s7 = inlined_call_operand.hbm [shape: f32[2,16,32], index: 7, kind: output, shape index: {}]
  %s8 = sld [smem:[#allocation0]]
  $region73: #{tpu_custom_call.1} parent=0
    _
  %s10 = ssub.s32 1, %s8
  %s11 = scalar_select 0, %s10, %s8
  $region1: #{tpu_custom_call.1} parent=0
    #allocation3 [shape = 'u8[16384]{0}', space=vmem, size = 0x4000, scoped, tag = 'input window, operand 0']
    #allocation4 [shape = 's32[2]{0}', space=sflag, size = 0x8, scoped, tag = 'scoped memory for tpu_custom_call.1']
    #allocation5 [shape = 's32[2]{0}', space=sflag, size = 0x8, scoped, tag = 'scoped memory for tpu_custom_call.1']
    #allocation6 [shape = 'u8[16384]{0}', space=vmem, size = 0x4000, scoped, tag = 'input window, operand 1, single buffered']
    #allocation7 [shape = 's32[1]{0}', space=sflag, size = 0x4, scoped, tag = 'scoped memory for tpu_custom_call.1']
    #allocation8 [shape = 'u8[147456]{0}', space=vmem, size = 0x24000, scoped, tag = 'input window, operand 3, single buffered']
    #allocation9 [shape = 'u8[16384]{0}', space=vmem, size = 0x4000, scoped, tag = 'output window, operand 0']
    %12 = vsyncpa [#allocation4], 0
    %s13 = scalar_lea.sflag [#allocation4], 1
    %14 = vsyncpa %s13, 0
    %15 = vsyncpa [#allocation7], 0
    %16 = vsyncpa [#allocation5], 0
    %s17 = scalar_lea.sflag [#allocation5], 1
    %18 = vsyncpa %s17, 0
    loop: start=0, step=1, limit=4
    $region2: #{tpu_custom_call.1} parent=1 // loop_pre_header
      _
    $region3: #{tpu_custom_call.1} parent=1 // loop_header
      %s20 = sphi 0, %s24
      %p21 = scmp.ge.s32.totalorder %s20, 4
      %s30 = sphi 0, %s32
      %s33 = sphi 0, %s30
      %s34 = sphi 0, %s33
      %s50 = sphi 0, %s34
      %s54 = sphi 0, %s54
      %s56 = sphi 0, %s54
      %s57 = sphi 0, %s56
      %s71 = sphi 0, %s57
      %s75 = sphi 0, %s75
      %s77 = sphi 0, %s75
      %s78 = sphi 0, %s77
      %s92 = sphi 0, %s78
      %s96 = sphi 0, %s96
      %s98 = sphi 0, %s96
      %s99 = sphi 0, %s98
      %s113 = sphi 0, %s99
      %s117 = sphi 0, %s117
      %s119 = sphi 0, %s117
      %s120 = sphi 0, %s119
      %s134 = sphi 0, %s120
      %s138 = sphi 0, %s138
      %s140 = sphi 0, %s138
      %s141 = sphi 0, %s140
      %s155 = sphi 0, %s141
      %s159 = sphi 0, %s159
      %s161 = sphi 0, %s159
      %s162 = sphi 0, %s161
      %s176 = sphi 0, %s162
      %s182 = sphi 0, %s184
      %s185 = sphi 0, %s182
      %s186 = sphi 0, %s185
      %s202 = sphi 0, %s186
    $region4: #{tpu_custom_call.1} parent=1 // loop_header_branch
      %23 = sbr.rel (%p21) target = $region8
    $region5: #{tpu_custom_call.1} parent=1 // loop_body
      %s25 = ssub.s32 %s20, 1
      %s26 = ssub.s32 %s20, 2
      %s27 = sadd.s32 %s20, 1
      %s28 = ssub.s32 %s20, %s27
      %p29 = scmp.eq.s32.totalorder %s28, 0
      %s31 = sadd.s32 %s30, 1
      %s32 = scalar_select %p29, %s30, %s31
      %p35 = pneg %p29
      %p36 = scmp.eq.s32.totalorder %s20, 1
      %p37 = por %p35, %p36
      %p38 = scmp.ne.s32.totalorder %s30, %s33
      %p39 = scmp.eq.s32.totalorder %s20, 0
      %p40 = por %p38, %p39
      %p41 = scmp.ne.s32.totalorder %s30, %s33
      %p42 = scmp.eq.s32.totalorder %s25, 1
      %p43 = por %p41, %p42
      %p44 = scmp.ne.s32.totalorder %s33, %s34
      %p45 = scmp.eq.s32.totalorder %s25, 0
      %p46 = por %p44, %p45
      %p47 = scmp.ne.s32.totalorder %s33, %s34
      %p48 = scmp.eq.s32.totalorder %s26, 1
      %p49 = por %p47, %p48
      %p51 = scmp.ne.s32.totalorder %s34, %s50
      %p52 = scmp.eq.s32.totalorder %s26, 0
      %p53 = por %p51, %p52
      %s55 = sadd.s32 %s54, 1
      %p58 = scmp.eq.s32.totalorder %s20, 1
      %p59 = scmp.ne.s32.totalorder %s54, %s56
      %p60 = scmp.eq.s32.totalorder %s20, 0
      %p61 = por %p59, %p60
      %p62 = scmp.ne.s32.totalorder %s54, %s56
      %p63 = scmp.eq.s32.totalorder %s25, 1
      %p64 = por %p62, %p63
      %p65 = scmp.ne.s32.totalorder %s56, %s57
      %p66 = scmp.eq.s32.totalorder %s25, 0
      %p67 = por %p65, %p66
      %p68 = scmp.ne.s32.totalorder %s56, %s57
      %p69 = scmp.eq.s32.totalorder %s26, 1
      %p70 = por %p68, %p69
      %p72 = scmp.ne.s32.totalorder %s57, %s71
      %p73 = scmp.eq.s32.totalorder %s26, 0
      %p74 = por %p72, %p73
      %s76 = sadd.s32 %s75, 1
      %p79 = scmp.eq.s32.totalorder %s20, 1
      %p80 = scmp.ne.s32.totalorder %s75, %s77
      %p81 = scmp.eq.s32.totalorder %s20, 0
      %p82 = por %p80, %p81
      %p83 = scmp.ne.s32.totalorder %s75, %s77
      %p84 = scmp.eq.s32.totalorder %s25, 1
      %p85 = por %p83, %p84
      %p86 = scmp.ne.s32.totalorder %s77, %s78
      %p87 = scmp.eq.s32.totalorder %s25, 0
      %p88 = por %p86, %p87
      %p89 = scmp.ne.s32.totalorder %s77, %s78
      %p90 = scmp.eq.s32.totalorder %s26, 1
      %p91 = por %p89, %p90
      %p93 = scmp.ne.s32.totalorder %s78, %s92
      %p94 = scmp.eq.s32.totalorder %s26, 0
      %p95 = por %p93, %p94
      %s97 = sadd.s32 %s96, 1
      %p100 = scmp.eq.s32.totalorder %s20, 1
      %p101 = scmp.ne.s32.totalorder %s96, %s98
      %p102 = scmp.eq.s32.totalorder %s20, 0
      %p103 = por %p101, %p102
      %p104 = scmp.ne.s32.totalorder %s96, %s98
      %p105 = scmp.eq.s32.totalorder %s25, 1
      %p106 = por %p104, %p105
      %p107 = scmp.ne.s32.totalorder %s98, %s99
      %p108 = scmp.eq.s32.totalorder %s25, 0
      %p109 = por %p107, %p108
      %p110 = scmp.ne.s32.totalorder %s98, %s99
      %p111 = scmp.eq.s32.totalorder %s26, 1
      %p112 = por %p110, %p111
      %p114 = scmp.ne.s32.totalorder %s99, %s113
      %p115 = scmp.eq.s32.totalorder %s26, 0
      %p116 = por %p114, %p115
      %s118 = sadd.s32 %s117, 1
      %p121 = scmp.eq.s32.totalorder %s20, 1
      %p122 = scmp.ne.s32.totalorder %s117, %s119
      %p123 = scmp.eq.s32.totalorder %s20, 0
      %p124 = por %p122, %p123
      %p125 = scmp.ne.s32.totalorder %s117, %s119
      %p126 = scmp.eq.s32.totalorder %s25, 1
      %p127 = por %p125, %p126
      %p128 = scmp.ne.s32.totalorder %s119, %s120
      %p129 = scmp.eq.s32.totalorder %s25, 0
      %p130 = por %p128, %p129
      %p131 = scmp.ne.s32.totalorder %s119, %s120
      %p132 = scmp.eq.s32.totalorder %s26, 1
      %p133 = por %p131, %p132
      %p135 = scmp.ne.s32.totalorder %s120, %s134
      %p136 = scmp.eq.s32.totalorder %s26, 0
      %p137 = por %p135, %p136
      %s139 = sadd.s32 %s138, 1
      %p142 = scmp.eq.s32.totalorder %s20, 1
      %p143 = scmp.ne.s32.totalorder %s138, %s140
      %p144 = scmp.eq.s32.totalorder %s20, 0
      %p145 = por %p143, %p144
      %p146 = scmp.ne.s32.totalorder %s138, %s140
      %p147 = scmp.eq.s32.totalorder %s25, 1
      %p148 = por %p146, %p147
      %p149 = scmp.ne.s32.totalorder %s140, %s141
      %p150 = scmp.eq.s32.totalorder %s25, 0
      %p151 = por %p149, %p150
      %p152 = scmp.ne.s32.totalorder %s140, %s141
      %p153 = scmp.eq.s32.totalorder %s26, 1
      %p154 = por %p152, %p153
      %p156 = scmp.ne.s32.totalorder %s141, %s155
      %p157 = scmp.eq.s32.totalorder %s26, 0
      %p158 = por %p156, %p157
      %s160 = sadd.s32 %s159, 1
      %p163 = scmp.eq.s32.totalorder %s20, 1
      %p164 = scmp.ne.s32.totalorder %s159, %s161
      %p165 = scmp.eq.s32.totalorder %s20, 0
      %p166 = por %p164, %p165
      %p167 = scmp.ne.s32.totalorder %s159, %s161
      %p168 = scmp.eq.s32.totalorder %s25, 1
      %p169 = por %p167, %p168
      %p170 = scmp.ne.s32.totalorder %s161, %s162
      %p171 = scmp.eq.s32.totalorder %s25, 0
      %p172 = por %p170, %p171
      %p173 = scmp.ne.s32.totalorder %s161, %s162
      %p174 = scmp.eq.s32.totalorder %s26, 1
      %p175 = por %p173, %p174
      %p177 = scmp.ne.s32.totalorder %s162, %s176
      %p178 = scmp.eq.s32.totalorder %s26, 0
      %p179 = por %p177, %p178
      %s180 = ssub.s32 %s20, %s27
      %p181 = scmp.eq.s32.totalorder %s180, 0
      %s183 = sadd.s32 %s182, 1
      %s184 = scalar_select %p181, %s182, %s183
      %p187 = pneg %p181
      %p188 = scmp.eq.s32.totalorder %s20, 1
      %p189 = por %p187, %p188
      %p190 = scmp.ne.s32.totalorder %s182, %s185
      %p191 = scmp.eq.s32.totalorder %s20, 0
      %p192 = por %p190, %p191
      %p193 = scmp.ne.s32.totalorder %s182, %s185
      %p194 = scmp.eq.s32.totalorder %s25, 1
      %p195 = por %p193, %p194
      %p196 = scmp.ne.s32.totalorder %s185, %s186
      %p197 = scmp.eq.s32.totalorder %s25, 0
      %p198 = por %p196, %p197
      %p199 = scmp.ne.s32.totalorder %s185, %s186
      %p200 = scmp.eq.s32.totalorder %s26, 1
      %p201 = por %p199, %p200
      %p203 = scmp.ne.s32.totalorder %s186, %s202
      %p204 = scmp.eq.s32.totalorder %s26, 0
      %p205 = por %p203, %p204
      %p206 = scmp.le.s32.totalorder 1, %s20
      %p207 = scmp.lt.s32.totalorder %s20, 3
      %p208 = pnand %p206, %p207
      %p209 = pneg %p208
      // Predicated region
      $region9: #{tpu_custom_call.1} parent=5 // pred_check
        _
      $region10: #{tpu_custom_call.1} parent=5 // pred_check_branch
        %211 = sbr.rel (%p208) target = $region12
      $region11: #{tpu_custom_call.1} parent=5 // pred_region
        %s212 = ssub.s32 %s20, 1
        // Predicated region
        $region13: #{tpu_custom_call.1} parent=11 // pred_check
          %p213 = pneg %p67
        $region14: #{tpu_custom_call.1} parent=11 // pred_check_branch
          %215 = sbr.rel (%p213) target = $region16
        $region15: #{tpu_custom_call.1} parent=11 // pred_region
          %s217 = ssub.s32 512, 512
          %218 = vsyncadd [#allocation7], %s217
          %s219 = sshll.u32 [#allocation6], 4
          %s220 = int_to_ptr.vmem [resolvable:$true] %s219
          %225 = dma.hbm_to_vmem [thread:$0]  %s1, 512, %s220, [#allocation7], 128, 128, 8
        $region16: #{tpu_custom_call.1} parent=11 // pred_fallthru
          _
        // Predicated region
        $region17: #{tpu_custom_call.1} parent=11 // pred_check
          %p226 = pneg %p88
        $region18: #{tpu_custom_call.1} parent=11 // pred_check_branch
          %228 = sbr.rel (%p226) target = $region20
        $region19: #{tpu_custom_call.1} parent=11 // pred_region
          _
        $region20: #{tpu_custom_call.1} parent=11 // pred_fallthru
          _
        // Predicated region
        $region21: #{tpu_custom_call.1} parent=11 // pred_check
          %p229 = pneg %p109
        $region22: #{tpu_custom_call.1} parent=11 // pred_check_branch
          %231 = sbr.rel (%p229) target = $region24
        $region23: #{tpu_custom_call.1} parent=11 // pred_region
          %s233 = ssub.s32 4608, 4608
          %234 = vsyncadd [#allocation7], %s233
          %s235 = sshll.u32 [#allocation8], 4
          %s236 = int_to_ptr.vmem [resolvable:$true] %s235
          %241 = dma.hbm_to_vmem [thread:$0]  %s3, 4608, %s236, [#allocation7], 128, 128, 8
        $region24: #{tpu_custom_call.1} parent=11 // pred_fallthru
          _
        // Predicated region
        $region25: #{tpu_custom_call.1} parent=11 // pred_check
          %p242 = pneg %p130
        $region26: #{tpu_custom_call.1} parent=11 // pred_check_branch
          %244 = sbr.rel (%p242) target = $region28
        $region27: #{tpu_custom_call.1} parent=11 // pred_region
          _
        $region28: #{tpu_custom_call.1} parent=11 // pred_fallthru
          _
        // Predicated region
        $region29: #{tpu_custom_call.1} parent=11 // pred_check
          %p245 = pneg %p151
        $region30: #{tpu_custom_call.1} parent=11 // pred_check_branch
          %247 = sbr.rel (%p245) target = $region32
        $region31: #{tpu_custom_call.1} parent=11 // pred_region
          _
        $region32: #{tpu_custom_call.1} parent=11 // pred_fallthru
          _
        // Predicated region
        $region33: #{tpu_custom_call.1} parent=11 // pred_check
          %p248 = pneg %p172
        $region34: #{tpu_custom_call.1} parent=11 // pred_check_branch
          %250 = sbr.rel (%p248) target = $region36
        $region35: #{tpu_custom_call.1} parent=11 // pred_region
          _
        $region36: #{tpu_custom_call.1} parent=11 // pred_fallthru
          _
      $region12: #{tpu_custom_call.1} parent=5 // pred_fallthru
        _
      %p251 = scmp.lt.s32.totalorder %s20, 2
      // Predicated region
      $region37: #{tpu_custom_call.1} parent=5 // pred_check
        %p252 = pneg %p251
      $region38: #{tpu_custom_call.1} parent=5 // pred_check_branch
        %254 = sbr.rel (%p252) target = $region40
      $region39: #{tpu_custom_call.1} parent=5 // pred_region
        // Predicated region
        $region41: #{tpu_custom_call.1} parent=39 // pred_check
          %p255 = pneg %p40
        $region42: #{tpu_custom_call.1} parent=39 // pred_check_branch
          %257 = sbr.rel (%p255) target = $region44
        $region43: #{tpu_custom_call.1} parent=39 // pred_region
          %s258 = sand.u32 %s30, 1
          %s259 = scalar_lea.sflag [#allocation4], %s258
          %s260 = sand.u32 %s30, 1
          %s261 = smul.addr %s260, 16
          %s262 = scalar_lea.vmem [#allocation3], %s261
          %s264 = ssub.s32 256, 256
          %265 = vsyncadd %s259, %s264
          %s266 = smul.addr %s20, 2
          %s267 = smul.addr %s266, 128
          %s268 = scalar_lea.hbm %s0, %s267
          %s269 = sshll.u32 %s262, 4
          %s270 = int_to_ptr.vmem [resolvable:$true] %s269
          %275 = dma.hbm_to_vmem [thread:$0]  %s268, 256, %s270, %s259, 128, 128, 8
        $region44: #{tpu_custom_call.1} parent=39 // pred_fallthru
          _
      $region40: #{tpu_custom_call.1} parent=5 // pred_fallthru
        _
      %p276 = scmp.le.s32.totalorder 1, %s20
      %p277 = scmp.lt.s32.totalorder %s20, 3
      %p278 = pnand %p276, %p277
      %p279 = pneg %p278
      // Predicated region
      $region45: #{tpu_custom_call.1} parent=5 // pred_check
        _
      $region46: #{tpu_custom_call.1} parent=5 // pred_check_branch
        %281 = sbr.rel (%p278) target = $region48
      $region47: #{tpu_custom_call.1} parent=5 // pred_region
        %s282 = ssub.s32 %s20, 1
        %s283 = sand.u32 %s33, 1
        %s284 = scalar_lea.sflag [#allocation4], %s283
        %s285 = sand.u32 %s33, 1
        %s286 = smul.addr %s285, 16
        %s287 = scalar_lea.vmem [#allocation3], %s286
        // Predicated region
        $region49: #{tpu_custom_call.1} parent=47 // pred_check
          %p288 = pneg %p46
        $region50: #{tpu_custom_call.1} parent=47 // pred_check_branch
          %290 = sbr.rel (%p288) target = $region52
        $region51: #{tpu_custom_call.1} parent=47 // pred_region
          %291 = dma.done %s284, 256
        $region52: #{tpu_custom_call.1} parent=47 // pred_fallthru
          _
        // Predicated region
        $region53: #{tpu_custom_call.1} parent=47 // pred_check
          %p292 = pneg %p67
        $region54: #{tpu_custom_call.1} parent=47 // pred_check_branch
          %294 = sbr.rel (%p292) target = $region56
        $region55: #{tpu_custom_call.1} parent=47 // pred_region
          %295 = dma.done [#allocation7], 512
        $region56: #{tpu_custom_call.1} parent=47 // pred_fallthru
          _
        // Predicated region
        $region57: #{tpu_custom_call.1} parent=47 // pred_check
          %p296 = pneg %p109
        $region58: #{tpu_custom_call.1} parent=47 // pred_check_branch
          %298 = sbr.rel (%p296) target = $region60
        $region59: #{tpu_custom_call.1} parent=47 // pred_region
          %299 = dma.done [#allocation7], 4608
        $region60: #{tpu_custom_call.1} parent=47 // pred_fallthru
          _
        %s300 = sand.u32 %s33, 1
        %s301 = scalar_lea.sflag [#allocation4], %s300
        %s302 = sand.u32 %s33, 1
        %s303 = smul.addr %s302, 16
        %s304 = scalar_lea.vmem [#allocation3], %s303
        %p305 = pneg %p46
        %p306 = pneg %p43
        %p307 = pneg %p67
        %p308 = pneg %p64
        %p309 = pneg %p88
        %p310 = pneg %p85
        %p311 = pneg %p109
        %p312 = pneg %p106
        %p313 = pneg %p130
        %p314 = pneg %p127
        %p315 = pneg %p151
        %p316 = pneg %p148
        %p317 = pneg %p172
        %p318 = pneg %p169
        %p319 = pneg %p198
        %p320 = pneg %p195
        %s321 = sand.u32 %s185, 1
        %s322 = scalar_lea.sflag [#allocation5], %s321
        %s323 = sand.u32 %s185, 1
        %s324 = smul.addr %s323, 16
        %s325 = scalar_lea.vmem [#allocation9], %s324
        %v326 = vld [vmem:[%s287] sm:$0xff]
        %v327 = vld [vmem:[%s287 + $0x8] sm:$0xff]
        %v328 = vld [vmem:[#allocation6] sm:$0xff]
        %v329 = vld [vmem:[#allocation6 + $0x8] sm:$0xff]
        %v330 = vld [vmem:[#allocation6 + $0x10] sm:$0xff]
        %v331 = vld [vmem:[#allocation6 + $0x18] sm:$0xff]
        %v332 = vld [vmem:[%s2] sm:$0x1]
        %v334 = vlaneseq
        %v335 = vshrl.u32 %v334, 7
        %v336 = vsub.s32 0, %v335
        %v337 = vrot.slane %v332, %v336
        %vm339 = vcmask 261120
        %v341 = vsel %vm339, %v326, 0
        %v344 = vsel %vm339, %v327, 0
        %346 = vmatprep.subr.mxu0 0.0
        %347 = vmatpush1.msra.mxu0 %v328
        %348 = vmatprep.subr.mxu0 0.0
        %349 = vmatpush1.msra.mxu0 %v329
        %350 = vmatprep.subr.mxu0 0.0
        %351 = vmatpush1.msra.mxu0 %v330
        %352 = vmatprep.subr.mxu0 0.0
        %353 = vmatpush1.msra.mxu0 %v331
        %354 = vmatprep.subr.mxu0 0.0
        %355 = vmatpush1.msra.mxu0 0.0
        %356 = vmatprep.subr.mxu0 0.0
        %357 = vmatpush1.msra.mxu0 0.0
        %358 = vmatprep.subr.mxu0 0.0
        %359 = vmatpush1.msra.mxu0 0.0
        %360 = vmatprep.subr.mxu0 0.0
        %361 = vmatpush1.msra.mxu0 0.0
        %362 = vmatprep.subr.mxu0 0.0
        %363 = vmatpush1.msra.mxu0 0.0
        %364 = vmatprep.subr.mxu0 0.0
        %365 = vmatpush1.msra.mxu0 0.0
        %366 = vmatprep.subr.mxu0 0.0
        %367 = vmatpush1.msra.mxu0 0.0
        %368 = vmatprep.subr.mxu0 0.0
        %369 = vmatpush1.msra.mxu0 0.0
        %370 = vmatprep.subr.mxu0 0.0
        %371 = vmatpush1.msra.mxu0 0.0
        %372 = vmatprep.subr.mxu0 0.0
        %373 = vmatpush1.msra.mxu0 0.0
        %374 = vmatprep.subr.mxu0 0.0
        %375 = vmatpush1.msra.mxu0 0.0
        %376 = vmatprep.subr.mxu0 0.0
        %377 = vmatpush1.msra.mxu0 0.0
        %378 = vmatprep.subr.mxu0 0.0
        %379 = vmatpush1.msra.mxu0 0.0
        %380 = vmatprep.subr.mxu0 0.0
        %381 = vmatpush1.msra.mxu0 0.0
        %382 = vmatprep.subr.mxu0 0.0
        %383 = vmatpush1.msra.mxu0 0.0
        %384 = vmatprep.subr.mxu0 0.0
        %385 = vmatpush1.msra.mxu0 0.0
        %386 = vmatprep.subr.mxu0 0.0
        %387 = vmatpush1.msra.mxu0 0.0
        %388 = vmatprep.subr.mxu0 0.0
        %389 = vmatpush1.msra.mxu0 0.0
        %390 = vmatprep.subr.mxu0 0.0
        %391 = vmatpush1.msra.mxu0 0.0
        %392 = vmatprep.subr.mxu0 0.0
        %393 = vmatpush1.msra.mxu0 0.0
        %394 = vmatprep.subr.mxu0 0.0
        %395 = vmatpush1.msra.mxu0 0.0
        %396 = vmatprep.subr.mxu0 0.0
        %397 = vmatpush1.msra.mxu0 0.0
        %398 = vmatprep.subr.mxu0 0.0
        %399 = vmatpush1.msra.mxu0 0.0
        %400 = vmatprep.subr.mxu0 0.0
        %401 = vmatpush1.msra.mxu0 0.0
        %402 = vmatprep.subr.mxu0 0.0
        %403 = vmatpush1.msra.mxu0 0.0
        %404 = vmatprep.subr.mxu0 0.0
        %405 = vmatpush1.msra.mxu0 0.0
        %406 = vmatprep.subr.mxu0 0.0
        %407 = vmatpush1.msra.mxu0 0.0
        %408 = vmatprep.subr.mxu0 0.0
        %409 = vmatpush1.msra.mxu0 0.0
        %410 = vmatprep.mubr.f32.mxu0 0.0
        %411 = vmatmul.mubr.f32.gmra.mrb[0].mxu0 %v341
        %v412 = vpop.f32.mrb[0].mxu0
        %v413 = vadd.f32 %v337, %v412
        %v414 = vpop.f32.mrb[0].mxu0
        %415 = vmatprep.mubr.f32.mxu0 0.0
        %416 = vmatmul.mubr.f32.gmra.mrb[0].mxu0 %v344
        %v417 = vpop.f32.mrb[0].mxu0
        %v418 = vadd.f32 %v337, %v417
        %v419 = vpop.f32.mrb[0].mxu0
        %420 = vdwg.mxu0
        %421 = vst.msk [vmem:[#allocation2] sm:$0xff] %vm339, 0.0
        %422 = vst.msk [vmem:[#allocation2 + $0x18] sm:$0xff] %vm339, 0.0
        %423 = vst.msk [vmem:[#allocation2 + $0x8] sm:$0xff] %vm339, %v413
        %424 = vst.msk [vmem:[#allocation2 + $0x10] sm:$0xff] %vm339, %v418
        %v425 = vld [vmem:[#allocation2] sm:$0xff]
        %v426 = vld [vmem:[#allocation2 + $0x8] sm:$0xff]
        %v427 = vld [vmem:[#allocation2 + $0x10] sm:$0xff]
        %v428 = vld [vmem:[#allocation2 + $0x18] sm:$0xff]
        %v429 = vld [vmem:[#allocation8] sm:$0xff]
        %v430 = vld [vmem:[#allocation8 + $0x8] sm:$0xff]
        %v431 = vld [vmem:[#allocation8 + $0x10] sm:$0xff]
        %v432 = vld [vmem:[#allocation8 + $0x18] sm:$0xff]
        %s433 = scalar_lea.vmem [#allocation8], 32
        %v434 = vld [vmem:[%s433] sm:$0xff]
        %v435 = vld [vmem:[%s433 + $0x8] sm:$0xff]
        %v436 = vld [vmem:[%s433 + $0x10] sm:$0xff]
        %v437 = vld [vmem:[%s433 + $0x18] sm:$0xff]
        %v439 = vsel %vm339, %v426, 0
        %v442 = vsel %vm339, %v427, 0
        %444 = vmatprep.subr.mxu0 0.0
        %445 = vmatpush1.msra.mxu0 %v434
        %446 = vmatprep.subr.mxu0 0.0
        %447 = vmatpush1.msra.mxu0 %v435
        %448 = vmatprep.subr.mxu0 0.0
        %449 = vmatpush1.msra.mxu0 %v436
        %450 = vmatprep.subr.mxu0 0.0
        %451 = vmatpush1.msra.mxu0 %v437
        %452 = vmatprep.subr.mxu0 0.0
        %453 = vmatpush1.msra.mxu0 0.0
        %454 = vmatprep.subr.mxu0 0.0
        %455 = vmatpush1.msra.mxu0 0.0
        %456 = vmatprep.subr.mxu0 0.0
        %457 = vmatpush1.msra.mxu0 0.0
        %458 = vmatprep.subr.mxu0 0.0
        %459 = vmatpush1.msra.mxu0 0.0
        %460 = vmatprep.subr.mxu0 0.0
        %461 = vmatpush1.msra.mxu0 0.0
        %462 = vmatprep.subr.mxu0 0.0
        %463 = vmatpush1.msra.mxu0 0.0
        %464 = vmatprep.subr.mxu0 0.0
        %465 = vmatpush1.msra.mxu0 0.0
        %466 = vmatprep.subr.mxu0 0.0
        %467 = vmatpush1.msra.mxu0 0.0
        %468 = vmatprep.subr.mxu0 0.0
        %469 = vmatpush1.msra.mxu0 0.0
        %470 = vmatprep.subr.mxu0 0.0
        %471 = vmatpush1.msra.mxu0 0.0
        %472 = vmatprep.subr.mxu0 0.0
        %473 = vmatpush1.msra.mxu0 0.0
        %474 = vmatprep.subr.mxu0 0.0
        %475 = vmatpush1.msra.mxu0 0.0
        %476 = vmatprep.subr.mxu0 0.0
        %477 = vmatpush1.msra.mxu0 0.0
        %478 = vmatprep.subr.mxu0 0.0
        %479 = vmatpush1.msra.mxu0 0.0
        %480 = vmatprep.subr.mxu0 0.0
        %481 = vmatpush1.msra.mxu0 0.0
        %482 = vmatprep.subr.mxu0 0.0
        %483 = vmatpush1.msra.mxu0 0.0
        %484 = vmatprep.subr.mxu0 0.0
        %485 = vmatpush1.msra.mxu0 0.0
        %486 = vmatprep.subr.mxu0 0.0
        %487 = vmatpush1.msra.mxu0 0.0
        %488 = vmatprep.subr.mxu0 0.0
        %489 = vmatpush1.msra.mxu0 0.0
        %490 = vmatprep.subr.mxu0 0.0
        %491 = vmatpush1.msra.mxu0 0.0
        %492 = vmatprep.subr.mxu0 0.0
        %493 = vmatpush1.msra.mxu0 0.0
        %494 = vmatprep.subr.mxu0 0.0
        %495 = vmatpush1.msra.mxu0 0.0
        %496 = vmatprep.subr.mxu0 0.0
        %497 = vmatpush1.msra.mxu0 0.0
        %498 = vmatprep.subr.mxu0 0.0
        %499 = vmatpush1.msra.mxu0 0.0
        %500 = vmatprep.subr.mxu0 0.0
        %501 = vmatpush1.msra.mxu0 0.0
        %502 = vmatprep.subr.mxu0 0.0
        %503 = vmatpush1.msra.mxu0 0.0
        %504 = vmatprep.subr.mxu0 0.0
        %505 = vmatpush1.msra.mxu0 0.0
        %506 = vmatprep.subr.mxu0 0.0
        %507 = vmatpush1.msra.mxu0 0.0
        %508 = vmatprep.mubr.f32.mxu0 0.0
        %509 = vmatmul.mubr.f32.gmra.mrb[0].mxu0 %v439
        %v510 = vpop.f32.mrb[0].mxu0
        %v511 = vadd.f32 0.0, %v510
        %v512 = vpop.f32.mrb[0].mxu0
        %513 = vmatprep.mubr.f32.mxu0 0.0
        %514 = vmatmul.mubr.f32.gmra.mrb[0].mxu0 %v442
        %v515 = vpop.f32.mrb[0].mxu0
        %v516 = vadd.f32 0.0, %v515
        %v517 = vpop.f32.mrb[0].mxu0
        %518 = vdwg.mxu0
        %vm520 = vcmask 1040384
        %v521 = vrot.slane %v425, 7
        %v522 = vrot.slane %v426, 7
        %v523 = vsel %vm520, %v521, %v522
        %v524 = vrot.slane %v427, 7
        %v525 = vsel %vm520, %v522, %v524
        %v526 = vsel %vm339, %v523, 0
        %v528 = vsel %vm339, %v525, 0
        %530 = vmatprep.subr.mxu0 0.0
        %531 = vmatpush1.msra.mxu0 %v429
        %532 = vmatprep.subr.mxu0 0.0
        %533 = vmatpush1.msra.mxu0 %v430
        %534 = vmatprep.subr.mxu0 0.0
        %535 = vmatpush1.msra.mxu0 %v431
        %536 = vmatprep.subr.mxu0 0.0
        %537 = vmatpush1.msra.mxu0 %v432
        %538 = vmatprep.subr.mxu0 0.0
        %539 = vmatpush1.msra.mxu0 0.0
        %540 = vmatprep.subr.mxu0 0.0
        %541 = vmatpush1.msra.mxu0 0.0
        %542 = vmatprep.subr.mxu0 0.0
        %543 = vmatpush1.msra.mxu0 0.0
        %544 = vmatprep.subr.mxu0 0.0
        %545 = vmatpush1.msra.mxu0 0.0
        %546 = vmatprep.subr.mxu0 0.0
        %547 = vmatpush1.msra.mxu0 0.0
        %548 = vmatprep.subr.mxu0 0.0
        %549 = vmatpush1.msra.mxu0 0.0
        %550 = vmatprep.subr.mxu0 0.0
        %551 = vmatpush1.msra.mxu0 0.0
        %552 = vmatprep.subr.mxu0 0.0
        %553 = vmatpush1.msra.mxu0 0.0
        %554 = vmatprep.subr.mxu0 0.0
        %555 = vmatpush1.msra.mxu0 0.0
        %556 = vmatprep.subr.mxu0 0.0
        %557 = vmatpush1.msra.mxu0 0.0
        %558 = vmatprep.subr.mxu0 0.0
        %559 = vmatpush1.msra.mxu0 0.0
        %560 = vmatprep.subr.mxu0 0.0
        %561 = vmatpush1.msra.mxu0 0.0
        %562 = vmatprep.subr.mxu0 0.0
        %563 = vmatpush1.msra.mxu0 0.0
        %564 = vmatprep.subr.mxu0 0.0
        %565 = vmatpush1.msra.mxu0 0.0
        %566 = vmatprep.subr.mxu0 0.0
        %567 = vmatpush1.msra.mxu0 0.0
        %568 = vmatprep.subr.mxu0 0.0
        %569 = vmatpush1.msra.mxu0 0.0
        %570 = vmatprep.subr.mxu0 0.0
        %571 = vmatpush1.msra.mxu0 0.0
        %572 = vmatprep.subr.mxu0 0.0
        %573 = vmatpush1.msra.mxu0 0.0
        %574 = vmatprep.subr.mxu0 0.0
        %575 = vmatpush1.msra.mxu0 0.0
        %576 = vmatprep.subr.mxu0 0.0
        %577 = vmatpush1.msra.mxu0 0.0
        %578 = vmatprep.subr.mxu0 0.0
        %579 = vmatpush1.msra.mxu0 0.0
        %580 = vmatprep.subr.mxu0 0.0
        %581 = vmatpush1.msra.mxu0 0.0
        %582 = vmatprep.subr.mxu0 0.0
        %583 = vmatpush1.msra.mxu0 0.0
        %584 = vmatprep.subr.mxu0 0.0
        %585 = vmatpush1.msra.mxu0 0.0
        %586 = vmatprep.subr.mxu0 0.0
        %587 = vmatpush1.msra.mxu0 0.0
        %588 = vmatprep.subr.mxu0 0.0
        %589 = vmatpush1.msra.mxu0 0.0
        %590 = vmatprep.subr.mxu0 0.0
        %591 = vmatpush1.msra.mxu0 0.0
        %592 = vmatprep.subr.mxu0 0.0
        %593 = vmatpush1.msra.mxu0 0.0
        %594 = vmatprep.mubr.f32.mxu0 0.0
        %595 = vmatmul.mubr.f32.gmra.mrb[0].mxu0 %v526
        %v596 = vpop.f32.mrb[0].mxu0
        %v597 = vadd.f32 %v511, %v596
        %v598 = vpop.f32.mrb[0].mxu0
        %599 = vmatprep.mubr.f32.mxu0 0.0
        %600 = vmatmul.mubr.f32.gmra.mrb[0].mxu0 %v528
        %v601 = vpop.f32.mrb[0].mxu0
        %v602 = vadd.f32 %v516, %v601
        %v603 = vpop.f32.mrb[0].mxu0
        %604 = vdwg.mxu0
        %s605 = scalar_lea.vmem [#allocation8], 64
        %v606 = vld [vmem:[%s605] sm:$0xff]
        %v607 = vld [vmem:[%s605 + $0x8] sm:$0xff]
        %v608 = vld [vmem:[%s605 + $0x10] sm:$0xff]
        %v609 = vld [vmem:[%s605 + $0x18] sm:$0xff]
        %vm611 = vcmask 1046528
        %v612 = vrot.slane %v426, 1
        %v613 = vrot.slane %v427, 1
        %v614 = vsel %vm611, %v612, %v613
        %v615 = vrot.slane %v428, 1
        %v616 = vsel %vm611, %v613, %v615
        %v617 = vsel %vm339, %v614, 0
        %v619 = vsel %vm339, %v616, 0
        %621 = vmatprep.subr.mxu0 0.0
        %622 = vmatpush1.msra.mxu0 %v606
        %623 = vmatprep.subr.mxu0 0.0
        %624 = vmatpush1.msra.mxu0 %v607
        %625 = vmatprep.subr.mxu0 0.0
        %626 = vmatpush1.msra.mxu0 %v608
        %627 = vmatprep.subr.mxu0 0.0
        %628 = vmatpush1.msra.mxu0 %v609
        %629 = vmatprep.subr.mxu0 0.0
        %630 = vmatpush1.msra.mxu0 0.0
        %631 = vmatprep.subr.mxu0 0.0
        %632 = vmatpush1.msra.mxu0 0.0
        %633 = vmatprep.subr.mxu0 0.0
        %634 = vmatpush1.msra.mxu0 0.0
        %635 = vmatprep.subr.mxu0 0.0
        %636 = vmatpush1.msra.mxu0 0.0
        %637 = vmatprep.subr.mxu0 0.0
        %638 = vmatpush1.msra.mxu0 0.0
        %639 = vmatprep.subr.mxu0 0.0
        %640 = vmatpush1.msra.mxu0 0.0
        %641 = vmatprep.subr.mxu0 0.0
        %642 = vmatpush1.msra.mxu0 0.0
        %643 = vmatprep.subr.mxu0 0.0
        %644 = vmatpush1.msra.mxu0 0.0
        %645 = vmatprep.subr.mxu0 0.0
        %646 = vmatpush1.msra.mxu0 0.0
        %647 = vmatprep.subr.mxu0 0.0
        %648 = vmatpush1.msra.mxu0 0.0
        %649 = vmatprep.subr.mxu0 0.0
        %650 = vmatpush1.msra.mxu0 0.0
        %651 = vmatprep.subr.mxu0 0.0
        %652 = vmatpush1.msra.mxu0 0.0
        %653 = vmatprep.subr.mxu0 0.0
        %654 = vmatpush1.msra.mxu0 0.0
        %655 = vmatprep.subr.mxu0 0.0
        %656 = vmatpush1.msra.mxu0 0.0
        %657 = vmatprep.subr.mxu0 0.0
        %658 = vmatpush1.msra.mxu0 0.0
        %659 = vmatprep.subr.mxu0 0.0
        %660 = vmatpush1.msra.mxu0 0.0
        %661 = vmatprep.subr.mxu0 0.0
        %662 = vmatpush1.msra.mxu0 0.0
        %663 = vmatprep.subr.mxu0 0.0
        %664 = vmatpush1.msra.mxu0 0.0
        %665 = vmatprep.subr.mxu0 0.0
        %666 = vmatpush1.msra.mxu0 0.0
        %667 = vmatprep.subr.mxu0 0.0
        %668 = vmatpush1.msra.mxu0 0.0
        %669 = vmatprep.subr.mxu0 0.0
        %670 = vmatpush1.msra.mxu0 0.0
        %671 = vmatprep.subr.mxu0 0.0
        %672 = vmatpush1.msra.mxu0 0.0
        %673 = vmatprep.subr.mxu0 0.0
        %674 = vmatpush1.msra.mxu0 0.0
        %675 = vmatprep.subr.mxu0 0.0
        %676 = vmatpush1.msra.mxu0 0.0
        %677 = vmatprep.subr.mxu0 0.0
        %678 = vmatpush1.msra.mxu0 0.0
        %679 = vmatprep.subr.mxu0 0.0
        %680 = vmatpush1.msra.mxu0 0.0
        %681 = vmatprep.subr.mxu0 0.0
        %682 = vmatpush1.msra.mxu0 0.0
        %683 = vmatprep.subr.mxu0 0.0
        %684 = vmatpush1.msra.mxu0 0.0
        %685 = vmatprep.mubr.f32.mxu0 0.0
        %686 = vmatmul.mubr.f32.gmra.mrb[0].mxu0 %v617
        %v687 = vpop.f32.mrb[0].mxu0
        %v688 = vadd.f32 0.0, %v687
        %v689 = vpop.f32.mrb[0].mxu0
        %690 = vmatprep.mubr.f32.mxu0 0.0
        %691 = vmatmul.mubr.f32.gmra.mrb[0].mxu0 %v619
        %v692 = vpop.f32.mrb[0].mxu0
        %v693 = vadd.f32 0.0, %v692
        %v694 = vpop.f32.mrb[0].mxu0
        %695 = vdwg.mxu0
        %v696 = vadd.f32 %v597, %v688
        %v697 = vadd.f32 %v602, %v693
        %v698 = vld [vmem:[%s4] sm:$0x1]
        %v700 = vlaneseq
        %v701 = vshrl.u32 %v700, 7
        %v702 = vsub.s32 0, %v701
        %v703 = vrot.slane %v698, %v702
        %v705 = vadd.f32 %v696, %v703
        %v706 = vadd.f32 %v697, %v703
        %v707 = vxor.u32 %v705, 2147483648
        %v708 = vxor.u32 %v706, 2147483648
        %v709 = vmul.f32 %v707, 1.442695
        %v710 = vpow.pop %v709
        %v711 = vmul.f32 %v708, 1.442695
        %v712 = vpow.pop %v711
        %v713 = vadd.f32 %v710, 1.0
        %v714 = vadd.f32 %v712, 1.0
        %v715 = vrcp.pop %v713
        %v716 = vmul.f32 1.0, %v715
        %v717 = vrcp.pop %v714
        %v718 = vmul.f32 1.0, %v717
        %721 = vrot.lane.b32.xlu0 %v716, 96
        %v722 = vpop.permute.xlu0 %721
        %723 = vrot.lane.b32.xlu0 %v718, 96
        %v724 = vpop.permute.xlu0 %723
        %v727 = vmul.f32 %v705, %v722
        %v728 = vmul.f32 %v706, %v724
        %v729 = vadd.f32 %v727, %v426
        %v730 = vadd.f32 %v728, %v427
        %v731 = vmul.f32 %v729, 0.70710677
        %v732 = vmul.f32 %v730, 0.70710677
        %733 = vst.msk [vmem:[#allocation2 + $0x8] sm:$0xff] %vm339, %v731
        %734 = vst.msk [vmem:[#allocation2 + $0x10] sm:$0xff] %vm339, %v732
        %v735 = vld [vmem:[#allocation2] sm:$0xff]
        %v736 = vld [vmem:[#allocation2 + $0x8] sm:$0xff]
        %v737 = vld [vmem:[#allocation2 + $0x10] sm:$0xff]
        %v738 = vld [vmem:[#allocation2 + $0x18] sm:$0xff]
        %s739 = scalar_lea.vmem [#allocation8], 96
        %v740 = vld [vmem:[%s739] sm:$0xff]
        %v741 = vld [vmem:[%s739 + $0x8] sm:$0xff]
        %v742 = vld [vmem:[%s739 + $0x10] sm:$0xff]
        %v743 = vld [vmem:[%s739 + $0x18] sm:$0xff]
        %s744 = scalar_lea.vmem [#allocation8], 128
        %v745 = vld [vmem:[%s744] sm:$0xff]
        %v746 = vld [vmem:[%s744 + $0x8] sm:$0xff]
        %v747 = vld [vmem:[%s744 + $0x10] sm:$0xff]
        %v748 = vld [vmem:[%s744 + $0x18] sm:$0xff]
        %v750 = vsel %vm339, %v736, 0
        %v753 = vsel %vm339, %v737, 0
        %755 = vmatprep.subr.mxu0 0.0
        %756 = vmatpush1.msra.mxu0 %v745
        %757 = vmatprep.subr.mxu0 0.0
        %758 = vmatpush1.msra.mxu0 %v746
        %759 = vmatprep.subr.mxu0 0.0
        %760 = vmatpush1.msra.mxu0 %v747
        %761 = vmatprep.subr.mxu0 0.0
        %762 = vmatpush1.msra.mxu0 %v748
        %763 = vmatprep.subr.mxu0 0.0
        %764 = vmatpush1.msra.mxu0 0.0
        %765 = vmatprep.subr.mxu0 0.0
        %766 = vmatpush1.msra.mxu0 0.0
        %767 = vmatprep.subr.mxu0 0.0
        %768 = vmatpush1.msra.mxu0 0.0
        %769 = vmatprep.subr.mxu0 0.0
        %770 = vmatpush1.msra.mxu0 0.0
        %771 = vmatprep.subr.mxu0 0.0
        %772 = vmatpush1.msra.mxu0 0.0
        %773 = vmatprep.subr.mxu0 0.0
        %774 = vmatpush1.msra.mxu0 0.0
        %775 = vmatprep.subr.mxu0 0.0
        %776 = vmatpush1.msra.mxu0 0.0
        %777 = vmatprep.subr.mxu0 0.0
        %778 = vmatpush1.msra.mxu0 0.0
        %779 = vmatprep.subr.mxu0 0.0
        %780 = vmatpush1.msra.mxu0 0.0
        %781 = vmatprep.subr.mxu0 0.0
        %782 = vmatpush1.msra.mxu0 0.0
        %783 = vmatprep.subr.mxu0 0.0
        %784 = vmatpush1.msra.mxu0 0.0
        %785 = vmatprep.subr.mxu0 0.0
        %786 = vmatpush1.msra.mxu0 0.0
        %787 = vmatprep.subr.mxu0 0.0
        %788 = vmatpush1.msra.mxu0 0.0
        %789 = vmatprep.subr.mxu0 0.0
        %790 = vmatpush1.msra.mxu0 0.0
        %791 = vmatprep.subr.mxu0 0.0
        %792 = vmatpush1.msra.mxu0 0.0
        %793 = vmatprep.subr.mxu0 0.0
        %794 = vmatpush1.msra.mxu0 0.0
        %795 = vmatprep.subr.mxu0 0.0
        %796 = vmatpush1.msra.mxu0 0.0
        %797 = vmatprep.subr.mxu0 0.0
        %798 = vmatpush1.msra.mxu0 0.0
        %799 = vmatprep.subr.mxu0 0.0
        %800 = vmatpush1.msra.mxu0 0.0
        %801 = vmatprep.subr.mxu0 0.0
        %802 = vmatpush1.msra.mxu0 0.0
        %803 = vmatprep.subr.mxu0 0.0
        %804 = vmatpush1.msra.mxu0 0.0
        %805 = vmatprep.subr.mxu0 0.0
        %806 = vmatpush1.msra.mxu0 0.0
        %807 = vmatprep.subr.mxu0 0.0
        %808 = vmatpush1.msra.mxu0 0.0
        %809 = vmatprep.subr.mxu0 0.0
        %810 = vmatpush1.msra.mxu0 0.0
        %811 = vmatprep.subr.mxu0 0.0
        %812 = vmatpush1.msra.mxu0 0.0
        %813 = vmatprep.subr.mxu0 0.0
        %814 = vmatpush1.msra.mxu0 0.0
        %815 = vmatprep.subr.mxu0 0.0
        %816 = vmatpush1.msra.mxu0 0.0
        %817 = vmatprep.subr.mxu0 0.0
        %818 = vmatpush1.msra.mxu0 0.0
        %819 = vmatprep.mubr.f32.mxu0 0.0
        %820 = vmatmul.mubr.f32.gmra.mrb[0].mxu0 %v750
        %v821 = vpop.f32.mrb[0].mxu0
        %v822 = vadd.f32 0.0, %v821
        %v823 = vpop.f32.mrb[0].mxu0
        %824 = vmatprep.mubr.f32.mxu0 0.0
        %825 = vmatmul.mubr.f32.gmra.mrb[0].mxu0 %v753
        %v826 = vpop.f32.mrb[0].mxu0
        %v827 = vadd.f32 0.0, %v826
        %v828 = vpop.f32.mrb[0].mxu0
        %829 = vdwg.mxu0
        %v831 = vrot.slane %v735, 7
        %v832 = vrot.slane %v736, 7
        %v833 = vsel %vm520, %v831, %v832
        %v834 = vrot.slane %v737, 7
        %v835 = vsel %vm520, %v832, %v834
        %v836 = vsel %vm339, %v833, 0
        %v838 = vsel %vm339, %v835, 0
        %840 = vmatprep.subr.mxu0 0.0
        %841 = vmatpush1.msra.mxu0 %v740
        %842 = vmatprep.subr.mxu0 0.0
        %843 = vmatpush1.msra.mxu0 %v741
        %844 = vmatprep.subr.mxu0 0.0
        %845 = vmatpush1.msra.mxu0 %v742
        %846 = vmatprep.subr.mxu0 0.0
        %847 = vmatpush1.msra.mxu0 %v743
        %848 = vmatprep.subr.mxu0 0.0
        %849 = vmatpush1.msra.mxu0 0.0
        %850 = vmatprep.subr.mxu0 0.0
        %851 = vmatpush1.msra.mxu0 0.0
        %852 = vmatprep.subr.mxu0 0.0
        %853 = vmatpush1.msra.mxu0 0.0
        %854 = vmatprep.subr.mxu0 0.0
        %855 = vmatpush1.msra.mxu0 0.0
        %856 = vmatprep.subr.mxu0 0.0
        %857 = vmatpush1.msra.mxu0 0.0
        %858 = vmatprep.subr.mxu0 0.0
        %859 = vmatpush1.msra.mxu0 0.0
        %860 = vmatprep.subr.mxu0 0.0
        %861 = vmatpush1.msra.mxu0 0.0
        %862 = vmatprep.subr.mxu0 0.0
        %863 = vmatpush1.msra.mxu0 0.0
        %864 = vmatprep.subr.mxu0 0.0
        %865 = vmatpush1.msra.mxu0 0.0
        %866 = vmatprep.subr.mxu0 0.0
        %867 = vmatpush1.msra.mxu0 0.0
        %868 = vmatprep.subr.mxu0 0.0
        %869 = vmatpush1.msra.mxu0 0.0
        %870 = vmatprep.subr.mxu0 0.0
        %871 = vmatpush1.msra.mxu0 0.0
        %872 = vmatprep.subr.mxu0 0.0
        %873 = vmatpush1.msra.mxu0 0.0
        %874 = vmatprep.subr.mxu0 0.0
        %875 = vmatpush1.msra.mxu0 0.0
        %876 = vmatprep.subr.mxu0 0.0
        %877 = vmatpush1.msra.mxu0 0.0
        %878 = vmatprep.subr.mxu0 0.0
        %879 = vmatpush1.msra.mxu0 0.0
        %880 = vmatprep.subr.mxu0 0.0
        %881 = vmatpush1.msra.mxu0 0.0
        %882 = vmatprep.subr.mxu0 0.0
        %883 = vmatpush1.msra.mxu0 0.0
        %884 = vmatprep.subr.mxu0 0.0
        %885 = vmatpush1.msra.mxu0 0.0
        %886 = vmatprep.subr.mxu0 0.0
        %887 = vmatpush1.msra.mxu0 0.0
        %888 = vmatprep.subr.mxu0 0.0
        %889 = vmatpush1.msra.mxu0 0.0
        %890 = vmatprep.subr.mxu0 0.0
        %891 = vmatpush1.msra.mxu0 0.0
        %892 = vmatprep.subr.mxu0 0.0
        %893 = vmatpush1.msra.mxu0 0.0
        %894 = vmatprep.subr.mxu0 0.0
        %895 = vmatpush1.msra.mxu0 0.0
        %896 = vmatprep.subr.mxu0 0.0
        %897 = vmatpush1.msra.mxu0 0.0
        %898 = vmatprep.subr.mxu0 0.0
        %899 = vmatpush1.msra.mxu0 0.0
        %900 = vmatprep.subr.mxu0 0.0
        %901 = vmatpush1.msra.mxu0 0.0
        %902 = vmatprep.subr.mxu0 0.0
        %903 = vmatpush1.msra.mxu0 0.0
        %904 = vmatprep.mubr.f32.mxu0 0.0
        %905 = vmatmul.mubr.f32.gmra.mrb[0].mxu0 %v836
        %v906 = vpop.f32.mrb[0].mxu0
        %v907 = vadd.f32 %v822, %v906
        %v908 = vpop.f32.mrb[0].mxu0
        %909 = vmatprep.mubr.f32.mxu0 0.0
        %910 = vmatmul.mubr.f32.gmra.mrb[0].mxu0 %v838
        %v911 = vpop.f32.mrb[0].mxu0
        %v912 = vadd.f32 %v827, %v911
        %v913 = vpop.f32.mrb[0].mxu0
        %914 = vdwg.mxu0
        %s915 = scalar_lea.vmem [#allocation8], 160
        %v916 = vld [vmem:[%s915] sm:$0xff]
        %v917 = vld [vmem:[%s915 + $0x8] sm:$0xff]
        %v918 = vld [vmem:[%s915 + $0x10] sm:$0xff]
        %v919 = vld [vmem:[%s915 + $0x18] sm:$0xff]
        %v921 = vrot.slane %v736, 1
        %v922 = vrot.slane %v737, 1
        %v923 = vsel %vm611, %v921, %v922
        %v924 = vrot.slane %v738, 1
        %v925 = vsel %vm611, %v922, %v924
        %v926 = vsel %vm339, %v923, 0
        %v928 = vsel %vm339, %v925, 0
        %930 = vmatprep.subr.mxu0 0.0
        %931 = vmatpush1.msra.mxu0 %v916
        %932 = vmatprep.subr.mxu0 0.0
        %933 = vmatpush1.msra.mxu0 %v917
        %934 = vmatprep.subr.mxu0 0.0
        %935 = vmatpush1.msra.mxu0 %v918
        %936 = vmatprep.subr.mxu0 0.0
        %937 = vmatpush1.msra.mxu0 %v919
        %938 = vmatprep.subr.mxu0 0.0
        %939 = vmatpush1.msra.mxu0 0.0
        %940 = vmatprep.subr.mxu0 0.0
        %941 = vmatpush1.msra.mxu0 0.0
        %942 = vmatprep.subr.mxu0 0.0
        %943 = vmatpush1.msra.mxu0 0.0
        %944 = vmatprep.subr.mxu0 0.0
        %945 = vmatpush1.msra.mxu0 0.0
        %946 = vmatprep.subr.mxu0 0.0
        %947 = vmatpush1.msra.mxu0 0.0
        %948 = vmatprep.subr.mxu0 0.0
        %949 = vmatpush1.msra.mxu0 0.0
        %950 = vmatprep.subr.mxu0 0.0
        %951 = vmatpush1.msra.mxu0 0.0
        %952 = vmatprep.subr.mxu0 0.0
        %953 = vmatpush1.msra.mxu0 0.0
        %954 = vmatprep.subr.mxu0 0.0
        %955 = vmatpush1.msra.mxu0 0.0
        %956 = vmatprep.subr.mxu0 0.0
        %957 = vmatpush1.msra.mxu0 0.0
        %958 = vmatprep.subr.mxu0 0.0
        %959 = vmatpush1.msra.mxu0 0.0
        %960 = vmatprep.subr.mxu0 0.0
        %961 = vmatpush1.msra.mxu0 0.0
        %962 = vmatprep.subr.mxu0 0.0
        %963 = vmatpush1.msra.mxu0 0.0
        %964 = vmatprep.subr.mxu0 0.0
        %965 = vmatpush1.msra.mxu0 0.0
        %966 = vmatprep.subr.mxu0 0.0
        %967 = vmatpush1.msra.mxu0 0.0
        %968 = vmatprep.subr.mxu0 0.0
        %969 = vmatpush1.msra.mxu0 0.0
        %970 = vmatprep.subr.mxu0 0.0
        %971 = vmatpush1.msra.mxu0 0.0
        %972 = vmatprep.subr.mxu0 0.0
        %973 = vmatpush1.msra.mxu0 0.0
        %974 = vmatprep.subr.mxu0 0.0
        %975 = vmatpush1.msra.mxu0 0.0
        %976 = vmatprep.subr.mxu0 0.0
        %977 = vmatpush1.msra.mxu0 0.0
        %978 = vmatprep.subr.mxu0 0.0
        %979 = vmatpush1.msra.mxu0 0.0
        %980 = vmatprep.subr.mxu0 0.0
        %981 = vmatpush1.msra.mxu0 0.0
        %982 = vmatprep.subr.mxu0 0.0
        %983 = vmatpush1.msra.mxu0 0.0
        %984 = vmatprep.subr.mxu0 0.0
        %985 = vmatpush1.msra.mxu0 0.0
        %986 = vmatprep.subr.mxu0 0.0
        %987 = vmatpush1.msra.mxu0 0.0
        %988 = vmatprep.subr.mxu0 0.0
        %989 = vmatpush1.msra.mxu0 0.0
        %990 = vmatprep.subr.mxu0 0.0
        %991 = vmatpush1.msra.mxu0 0.0
        %992 = vmatprep.subr.mxu0 0.0
        %993 = vmatpush1.msra.mxu0 0.0
        %994 = vmatprep.mubr.f32.mxu0 0.0
        %995 = vmatmul.mubr.f32.gmra.mrb[0].mxu0 %v926
        %v996 = vpop.f32.mrb[0].mxu0
        %v997 = vadd.f32 0.0, %v996
        %v998 = vpop.f32.mrb[0].mxu0
        %999 = vmatprep.mubr.f32.mxu0 0.0
        %1000 = vmatmul.mubr.f32.gmra.mrb[0].mxu0 %v928
        %v1001 = vpop.f32.mrb[0].mxu0
        %v1002 = vadd.f32 0.0, %v1001
        %v1003 = vpop.f32.mrb[0].mxu0
        %1004 = vdwg.mxu0
        %v1005 = vadd.f32 %v907, %v997
        %v1006 = vadd.f32 %v912, %v1002
        %s1007 = scalar_lea.vmem %s4, 1
        %v1008 = vld [vmem:[%s1007] sm:$0x1]
        %v1010 = vlaneseq
        %v1011 = vshrl.u32 %v1010, 7
        %v1012 = vsub.s32 0, %v1011
        %v1013 = vrot.slane %v1008, %v1012
        %v1015 = vadd.f32 %v1005, %v1013
        %v1016 = vadd.f32 %v1006, %v1013
        %v1017 = vxor.u32 %v1015, 2147483648
        %v1018 = vxor.u32 %v1016, 2147483648
        %v1019 = vmul.f32 %v1017, 1.442695
        %v1020 = vpow.pop %v1019
        %v1021 = vmul.f32 %v1018, 1.442695
        %v1022 = vpow.pop %v1021
        %v1023 = vadd.f32 %v1020, 1.0
        %v1024 = vadd.f32 %v1022, 1.0
        %v1025 = vrcp.pop %v1023
        %v1026 = vmul.f32 1.0, %v1025
        %v1027 = vrcp.pop %v1024
        %v1028 = vmul.f32 1.0, %v1027
        %1031 = vrot.lane.b32.xlu0 %v1026, 96
        %v1032 = vpop.permute.xlu0 %1031
        %1033 = vrot.lane.b32.xlu0 %v1028, 96
        %v1034 = vpop.permute.xlu0 %1033
        %v1037 = vmul.f32 %v1015, %v1032
        %v1038 = vmul.f32 %v1016, %v1034
        %v1039 = vadd.f32 %v1037, %v736
        %v1040 = vadd.f32 %v1038, %v737
        %v1041 = vmul.f32 %v1039, 0.70710677
        %v1042 = vmul.f32 %v1040, 0.70710677
        %1043 = vst.msk [vmem:[#allocation2 + $0x8] sm:$0xff] %vm339, %v1041
        %1044 = vst.msk [vmem:[#allocation2 + $0x10] sm:$0xff] %vm339, %v1042
        %v1045 = vld [vmem:[#allocation2] sm:$0xff]
        %v1046 = vld [vmem:[#allocation2 + $0x8] sm:$0xff]
        %v1047 = vld [vmem:[#allocation2 + $0x10] sm:$0xff]
        %v1048 = vld [vmem:[#allocation2 + $0x18] sm:$0xff]
        %s1049 = scalar_lea.vmem [#allocation8], 192
        %v1050 = vld [vmem:[%s1049] sm:$0xff]
        %v1051 = vld [vmem:[%s1049 + $0x8] sm:$0xff]
        %v1052 = vld [vmem:[%s1049 + $0x10] sm:$0xff]
        %v1053 = vld [vmem:[%s1049 + $0x18] sm:$0xff]
        %s1054 = scalar_lea.vmem [#allocation8], 224
        %v1055 = vld [vmem:[%s1054] sm:$0xff]
        %v1056 = vld [vmem:[%s1054 + $0x8] sm:$0xff]
        %v1057 = vld [vmem:[%s1054 + $0x10] sm:$0xff]
        %v1058 = vld [vmem:[%s1054 + $0x18] sm:$0xff]
        %v1060 = vsel %vm339, %v1046, 0
        %v1063 = vsel %vm339, %v1047, 0
        %1065 = vmatprep.subr.mxu0 0.0
        %1066 = vmatpush1.msra.mxu0 %v1055
        %1067 = vmatprep.subr.mxu0 0.0
        %1068 = vmatpush1.msra.mxu0 %v1056
        %1069 = vmatprep.subr.mxu0 0.0
        %1070 = vmatpush1.msra.mxu0 %v1057
        %1071 = vmatprep.subr.mxu0 0.0
        %1072 = vmatpush1.msra.mxu0 %v1058
        %1073 = vmatprep.subr.mxu0 0.0
        %1074 = vmatpush1.msra.mxu0 0.0
        %1075 = vmatprep.subr.mxu0 0.0
        %1076 = vmatpush1.msra.mxu0 0.0
        %1077 = vmatprep.subr.mxu0 0.0
        %1078 = vmatpush1.msra.mxu0 0.0
        %1079 = vmatprep.subr.mxu0 0.0
        %1080 = vmatpush1.msra.mxu0 0.0
        %1081 = vmatprep.subr.mxu0 0.0
        %1082 = vmatpush1.msra.mxu0 0.0
        %1083 = vmatprep.subr.mxu0 0.0
        %1084 = vmatpush1.msra.mxu0 0.0
        %1085 = vmatprep.subr.mxu0 0.0
        %1086 = vmatpush1.msra.mxu0 0.0
        %1087 = vmatprep.subr.mxu0 0.0
        %1088 = vmatpush1.msra.mxu0 0.0
        %1089 = vmatprep.subr.mxu0 0.0
        %1090 = vmatpush1.msra.mxu0 0.0
        %1091 = vmatprep.subr.mxu0 0.0
        %1092 = vmatpush1.msra.mxu0 0.0
        %1093 = vmatprep.subr.mxu0 0.0
        %1094 = vmatpush1.msra.mxu0 0.0
        %1095 = vmatprep.subr.mxu0 0.0
        %1096 = vmatpush1.msra.mxu0 0.0
        %1097 = vmatprep.subr.mxu0 0.0
        %1098 = vmatpush1.msra.mxu0 0.0
        %1099 = vmatprep.subr.mxu0 0.0
        %1100 = vmatpush1.msra.mxu0 0.0
        %1101 = vmatprep.subr.mxu0 0.0
        %1102 = vmatpush1.msra.mxu0 0.0
        %1103 = vmatprep.subr.mxu0 0.0
        %1104 = vmatpush1.msra.mxu0 0.0
        %1105 = vmatprep.subr.mxu0 0.0
        %1106 = vmatpush1.msra.mxu0 0.0
        %1107 = vmatprep.subr.mxu0 0.0
        %1108 = vmatpush1.msra.mxu0 0.0
        %1109 = vmatprep.subr.mxu0 0.0
        %1110 = vmatpush1.msra.mxu0 0.0
        %1111 = vmatprep.subr.mxu0 0.0
        %1112 = vmatpush1.msra.mxu0 0.0
        %1113 = vmatprep.subr.mxu0 0.0
        %1114 = vmatpush1.msra.mxu0 0.0
        %1115 = vmatprep.subr.mxu0 0.0
        %1116 = vmatpush1.msra.mxu0 0.0
        %1117 = vmatprep.subr.mxu0 0.0
        %1118 = vmatpush1.msra.mxu0 0.0
        %1119 = vmatprep.subr.mxu0 0.0
        %1120 = vmatpush1.msra.mxu0 0.0
        %1121 = vmatprep.subr.mxu0 0.0
        %1122 = vmatpush1.msra.mxu0 0.0
        %1123 = vmatprep.subr.mxu0 0.0
        %1124 = vmatpush1.msra.mxu0 0.0
        %1125 = vmatprep.subr.mxu0 0.0
        %1126 = vmatpush1.msra.mxu0 0.0
        %1127 = vmatprep.subr.mxu0 0.0
        %1128 = vmatpush1.msra.mxu0 0.0
        %1129 = vmatprep.mubr.f32.mxu0 0.0
        %1130 = vmatmul.mubr.f32.gmra.mrb[0].mxu0 %v1060
        %v1131 = vpop.f32.mrb[0].mxu0
        %v1132 = vadd.f32 0.0, %v1131
        %v1133 = vpop.f32.mrb[0].mxu0
        %1134 = vmatprep.mubr.f32.mxu0 0.0
        %1135 = vmatmul.mubr.f32.gmra.mrb[0].mxu0 %v1063
        %v1136 = vpop.f32.mrb[0].mxu0
        %v1137 = vadd.f32 0.0, %v1136
        %v1138 = vpop.f32.mrb[0].mxu0
        %1139 = vdwg.mxu0
        %v1141 = vrot.slane %v1045, 7
        %v1142 = vrot.slane %v1046, 7
        %v1143 = vsel %vm520, %v1141, %v1142
        %v1144 = vrot.slane %v1047, 7
        %v1145 = vsel %vm520, %v1142, %v1144
        %v1146 = vsel %vm339, %v1143, 0
        %v1148 = vsel %vm339, %v1145, 0
        %1150 = vmatprep.subr.mxu0 0.0
        %1151 = vmatpush1.msra.mxu0 %v1050
        %1152 = vmatprep.subr.mxu0 0.0
        %1153 = vmatpush1.msra.mxu0 %v1051
        %1154 = vmatprep.subr.mxu0 0.0
        %1155 = vmatpush1.msra.mxu0 %v1052
        %1156 = vmatprep.subr.mxu0 0.0
        %1157 = vmatpush1.msra.mxu0 %v1053
        %1158 = vmatprep.subr.mxu0 0.0
        %1159 = vmatpush1.msra.mxu0 0.0
        %1160 = vmatprep.subr.mxu0 0.0
        %1161 = vmatpush1.msra.mxu0 0.0
        %1162 = vmatprep.subr.mxu0 0.0
        %1163 = vmatpush1.msra.mxu0 0.0
        %1164 = vmatprep.subr.mxu0 0.0
        %1165 = vmatpush1.msra.mxu0 0.0
        %1166 = vmatprep.subr.mxu0 0.0
        %1167 = vmatpush1.msra.mxu0 0.0
        %1168 = vmatprep.subr.mxu0 0.0
        %1169 = vmatpush1.msra.mxu0 0.0
        %1170 = vmatprep.subr.mxu0 0.0
        %1171 = vmatpush1.msra.mxu0 0.0
        %1172 = vmatprep.subr.mxu0 0.0
        %1173 = vmatpush1.msra.mxu0 0.0
        %1174 = vmatprep.subr.mxu0 0.0
        %1175 = vmatpush1.msra.mxu0 0.0
        %1176 = vmatprep.subr.mxu0 0.0
        %1177 = vmatpush1.msra.mxu0 0.0
        %1178 = vmatprep.subr.mxu0 0.0
        %1179 = vmatpush1.msra.mxu0 0.0
        %1180 = vmatprep.subr.mxu0 0.0
        %1181 = vmatpush1.msra.mxu0 0.0
        %1182 = vmatprep.subr.mxu0 0.0
        %1183 = vmatpush1.msra.mxu0 0.0
        %1184 = vmatprep.subr.mxu0 0.0
        %1185 = vmatpush1.msra.mxu0 0.0
        %1186 = vmatprep.subr.mxu0 0.0
        %1187 = vmatpush1.msra.mxu0 0.0
        %1188 = vmatprep.subr.mxu0 0.0
        %1189 = vmatpush1.msra.mxu0 0.0
        %1190 = vmatprep.subr.mxu0 0.0
        %1191 = vmatpush1.msra.mxu0 0.0
        %1192 = vmatprep.subr.mxu0 0.0
        %1193 = vmatpush1.msra.mxu0 0.0
        %1194 = vmatprep.subr.mxu0 0.0
        %1195 = vmatpush1.msra.mxu0 0.0
        %1196 = vmatprep.subr.mxu0 0.0
        %1197 = vmatpush1.msra.mxu0 0.0
        %1198 = vmatprep.subr.mxu0 0.0
        %1199 = vmatpush1.msra.mxu0 0.0
        %1200 = vmatprep.subr.mxu0 0.0
        %1201 = vmatpush1.msra.mxu0 0.0
        %1202 = vmatprep.subr.mxu0 0.0
        %1203 = vmatpush1.msra.mxu0 0.0
        %1204 = vmatprep.subr.mxu0 0.0
        %1205 = vmatpush1.msra.mxu0 0.0
        %1206 = vmatprep.subr.mxu0 0.0
        %1207 = vmatpush1.msra.mxu0 0.0
        %1208 = vmatprep.subr.mxu0 0.0
        %1209 = vmatpush1.msra.mxu0 0.0
        %1210 = vmatprep.subr.mxu0 0.0
        %1211 = vmatpush1.msra.mxu0 0.0
        %1212 = vmatprep.subr.mxu0 0.0
        %1213 = vmatpush1.msra.mxu0 0.0
        %1214 = vmatprep.mubr.f32.mxu0 0.0
        %1215 = vmatmul.mubr.f32.gmra.mrb[0].mxu0 %v1146
        %v1216 = vpop.f32.mrb[0].mxu0
        %v1217 = vadd.f32 %v1132, %v1216
        %v1218 = vpop.f32.mrb[0].mxu0
        %1219 = vmatprep.mubr.f32.mxu0 0.0
        %1220 = vmatmul.mubr.f32.gmra.mrb[0].mxu0 %v1148
        %v1221 = vpop.f32.mrb[0].mxu0
        %v1222 = vadd.f32 %v1137, %v1221
        %v1223 = vpop.f32.mrb[0].mxu0
        %1224 = vdwg.mxu0
        %s1225 = scalar_lea.vmem [#allocation8], 256
        %v1226 = vld [vmem:[%s1225] sm:$0xff]
        %v1227 = vld [vmem:[%s1225 + $0x8] sm:$0xff]
        %v1228 = vld [vmem:[%s1225 + $0x10] sm:$0xff]
        %v1229 = vld [vmem:[%s1225 + $0x18] sm:$0xff]
        %v1231 = vrot.slane %v1046, 1
        %v1232 = vrot.slane %v1047, 1
        %v1233 = vsel %vm611, %v1231, %v1232
        %v1234 = vrot.slane %v1048, 1
        %v1235 = vsel %vm611, %v1232, %v1234
        %v1236 = vsel %vm339, %v1233, 0
        %v1238 = vsel %vm339, %v1235, 0
        %1240 = vmatprep.subr.mxu0 0.0
        %1241 = vmatpush1.msra.mxu0 %v1226
        %1242 = vmatprep.subr.mxu0 0.0
        %1243 = vmatpush1.msra.mxu0 %v1227
        %1244 = vmatprep.subr.mxu0 0.0
        %1245 = vmatpush1.msra.mxu0 %v1228
        %1246 = vmatprep.subr.mxu0 0.0
        %1247 = vmatpush1.msra.mxu0 %v1229
        %1248 = vmatprep.subr.mxu0 0.0
        %1249 = vmatpush1.msra.mxu0 0.0
        %1250 = vmatprep.subr.mxu0 0.0
        %1251 = vmatpush1.msra.mxu0 0.0
        %1252 = vmatprep.subr.mxu0 0.0
        %1253 = vmatpush1.msra.mxu0 0.0
        %1254 = vmatprep.subr.mxu0 0.0
        %1255 = vmatpush1.msra.mxu0 0.0
        %1256 = vmatprep.subr.mxu0 0.0
        %1257 = vmatpush1.msra.mxu0 0.0
        %1258 = vmatprep.subr.mxu0 0.0
        %1259 = vmatpush1.msra.mxu0 0.0
        %1260 = vmatprep.subr.mxu0 0.0
        %1261 = vmatpush1.msra.mxu0 0.0
        %1262 = vmatprep.subr.mxu0 0.0
        %1263 = vmatpush1.msra.mxu0 0.0
        %1264 = vmatprep.subr.mxu0 0.0
        %1265 = vmatpush1.msra.mxu0 0.0
        %1266 = vmatprep.subr.mxu0 0.0
        %1267 = vmatpush1.msra.mxu0 0.0
        %1268 = vmatprep.subr.mxu0 0.0
        %1269 = vmatpush1.msra.mxu0 0.0
        %1270 = vmatprep.subr.mxu0 0.0
        %1271 = vmatpush1.msra.mxu0 0.0
        %1272 = vmatprep.subr.mxu0 0.0
        %1273 = vmatpush1.msra.mxu0 0.0
        %1274 = vmatprep.subr.mxu0 0.0
        %1275 = vmatpush1.msra.mxu0 0.0
        %1276 = vmatprep.subr.mxu0 0.0
        %1277 = vmatpush1.msra.mxu0 0.0
        %1278 = vmatprep.subr.mxu0 0.0
        %1279 = vmatpush1.msra.mxu0 0.0
        %1280 = vmatprep.subr.mxu0 0.0
        %1281 = vmatpush1.msra.mxu0 0.0
        %1282 = vmatprep.subr.mxu0 0.0
        %1283 = vmatpush1.msra.mxu0 0.0
        %1284 = vmatprep.subr.mxu0 0.0
        %1285 = vmatpush1.msra.mxu0 0.0
        %1286 = vmatprep.subr.mxu0 0.0
        %1287 = vmatpush1.msra.mxu0 0.0
        %1288 = vmatprep.subr.mxu0 0.0
        %1289 = vmatpush1.msra.mxu0 0.0
        %1290 = vmatprep.subr.mxu0 0.0
        %1291 = vmatpush1.msra.mxu0 0.0
        %1292 = vmatprep.subr.mxu0 0.0
        %1293 = vmatpush1.msra.mxu0 0.0
        %1294 = vmatprep.subr.mxu0 0.0
        %1295 = vmatpush1.msra.mxu0 0.0
        %1296 = vmatprep.subr.mxu0 0.0
        %1297 = vmatpush1.msra.mxu0 0.0
        %1298 = vmatprep.subr.mxu0 0.0
        %1299 = vmatpush1.msra.mxu0 0.0
        %1300 = vmatprep.subr.mxu0 0.0
        %1301 = vmatpush1.msra.mxu0 0.0
        %1302 = vmatprep.subr.mxu0 0.0
        %1303 = vmatpush1.msra.mxu0 0.0
        %1304 = vmatprep.mubr.f32.mxu0 0.0
        %1305 = vmatmul.mubr.f32.gmra.mrb[0].mxu0 %v1236
        %v1306 = vpop.f32.mrb[0].mxu0
        %v1307 = vadd.f32 0.0, %v1306
        %v1308 = vpop.f32.mrb[0].mxu0
        %1309 = vmatprep.mubr.f32.mxu0 0.0
        %1310 = vmatmul.mubr.f32.gmra.mrb[0].mxu0 %v1238
        %v1311 = vpop.f32.mrb[0].mxu0
        %v1312 = vadd.f32 0.0, %v1311
        %v1313 = vpop.f32.mrb[0].mxu0
        %1314 = vdwg.mxu0
        %v1315 = vadd.f32 %v1217, %v1307
        %v1316 = vadd.f32 %v1222, %v1312
        %s1317 = scalar_lea.vmem %s4, 2
        %v1318 = vld [vmem:[%s1317] sm:$0x1]
        %v1320 = vlaneseq
        %v1321 = vshrl.u32 %v1320, 7
        %v1322 = vsub.s32 0, %v1321
        %v1323 = vrot.slane %v1318, %v1322
        %v1325 = vadd.f32 %v1315, %v1323
        %v1326 = vadd.f32 %v1316, %v1323
        %v1327 = vxor.u32 %v1325, 2147483648
        %v1328 = vxor.u32 %v1326, 2147483648
        %v1329 = vmul.f32 %v1327, 1.442695
        %v1330 = vpow.pop %v1329
        %v1331 = vmul.f32 %v1328, 1.442695
        %v1332 = vpow.pop %v1331
        %v1333 = vadd.f32 %v1330, 1.0
        %v1334 = vadd.f32 %v1332, 1.0
        %v1335 = vrcp.pop %v1333
        %v1336 = vmul.f32 1.0, %v1335
        %v1337 = vrcp.pop %v1334
        %v1338 = vmul.f32 1.0, %v1337
        %1341 = vrot.lane.b32.xlu0 %v1336, 96
        %v1342 = vpop.permute.xlu0 %1341
        %1343 = vrot.lane.b32.xlu0 %v1338, 96
        %v1344 = vpop.permute.xlu0 %1343
        %v1347 = vmul.f32 %v1325, %v1342
        %v1348 = vmul.f32 %v1326, %v1344
        %v1349 = vadd.f32 %v1347, %v1046
        %v1350 = vadd.f32 %v1348, %v1047
        %v1351 = vmul.f32 %v1349, 0.70710677
        %v1352 = vmul.f32 %v1350, 0.70710677
        %1353 = vst.msk [vmem:[#allocation2 + $0x8] sm:$0xff] %vm339, %v1351
        %1354 = vst.msk [vmem:[#allocation2 + $0x10] sm:$0xff] %vm339, %v1352
        %v1355 = vld [vmem:[#allocation2 + $0x8] sm:$0xff]
        %v1356 = vld [vmem:[#allocation2 + $0x10] sm:$0xff]
        %v1357 = vsel %vm339, %v1355, 0.0
        %1358 = vadd.xlane.f32.xlu0 %v1357
        %v1359 = vpop.xlane.xlu0 %1358
        %v1360 = vsel %vm339, %v1356, 0.0
        %1361 = vadd.xlane.f32.xlu0 %v1360
        %v1362 = vpop.xlane.xlu0 %1361
        %v1363 = vrcp.pop 32.0
        %v1364 = vmul.f32 %v1359, %v1363
        %v1365 = vmul.f32 %v1362, %v1363
        %v1366 = vsub.f32 %v1355, %v1364
        %v1367 = vsub.f32 %v1356, %v1365
        %v1368 = vmul.f32 %v1366, %v1366
        %v1369 = vmul.f32 %v1367, %v1367
        %v1370 = vsel %vm339, %v1368, 0.0
        %1371 = vadd.xlane.f32.xlu0 %v1370
        %v1372 = vpop.xlane.xlu0 %1371
        %v1373 = vsel %vm339, %v1369, 0.0
        %1374 = vadd.xlane.f32.xlu0 %v1373
        %v1375 = vpop.xlane.xlu0 %1374
        %v1376 = vmul.f32 %v1372, %v1363
        %v1377 = vmul.f32 %v1375, %v1363
        %v1378 = vadd.f32 %v1376, 1e-05
        %v1379 = vadd.f32 %v1377, 1e-05
        %v1380 = vrsqrt.pop %v1378
        %v1381 = vrsqrt.pop %v1379
        %v1382 = vmul.f32 %v1366, %v1380
        %v1383 = vmul.f32 %v1367, %v1381
        %v1384 = vld [vmem:[%s5] sm:$0x1]
        %v1386 = vlaneseq
        %v1387 = vshrl.u32 %v1386, 7
        %v1388 = vsub.s32 0, %v1387
        %v1389 = vrot.slane %v1384, %v1388
        %v1391 = vmul.f32 %v1382, %v1389
        %v1392 = vmul.f32 %v1383, %v1389
        %v1393 = vld [vmem:[%s6] sm:$0x1]
        %v1395 = vlaneseq
        %v1396 = vshrl.u32 %v1395, 7
        %v1397 = vsub.s32 0, %v1396
        %v1398 = vrot.slane %v1393, %v1397
        %v1400 = vadd.f32 %v1391, %v1398
        %v1401 = vadd.f32 %v1392, %v1398
        %1402 = vst.msk [vmem:[%s325] sm:$0xff] %vm339, %v1400
        %1403 = vst.msk [vmem:[%s325 + $0x8] sm:$0xff] %vm339, %v1401
        %s1404 = sand.u32 %s185, 1
        %s1405 = scalar_lea.sflag [#allocation5], %s1404
        %s1406 = sand.u32 %s185, 1
        %s1407 = smul.addr %s1406, 16
        %s1408 = scalar_lea.vmem [#allocation9], %s1407
        // Predicated region
        $region61: #{tpu_custom_call.1} parent=47 // pred_check
          %p1409 = pneg %p195
        $region62: #{tpu_custom_call.1} parent=47 // pred_check_branch
          %1411 = sbr.rel (%p1409) target = $region64
        $region63: #{tpu_custom_call.1} parent=47 // pred_region
          %s1413 = ssub.s32 256, 256
          %1414 = vsyncadd %s1405, %s1413
          %s1415 = smul.addr %s25, 2
          %s1416 = smul.addr %s1415, 128
          %s1417 = scalar_lea.hbm %s7, %s1416
          %s1418 = sshll.u32 %s1408, 4
          %s1419 = int_to_ptr.vmem [resolvable:$true] %s1418
          %1424 = dma.vmem_to_hbm [thread:$0]  %s1419, 256, %s1417, %s1405, 128, 128, 8
        $region64: #{tpu_custom_call.1} parent=47 // pred_fallthru
          _
      $region48: #{tpu_custom_call.1} parent=5 // pred_fallthru
        _
      %p1425 = scmp.le.s32.totalorder 2, %s20
      // Predicated region
      $region65: #{tpu_custom_call.1} parent=5 // pred_check
        %p1426 = pneg %p1425
      $region66: #{tpu_custom_call.1} parent=5 // pred_check_branch
        %1428 = sbr.rel (%p1426) target = $region68
      $region67: #{tpu_custom_call.1} parent=5 // pred_region
        %s1429 = ssub.s32 %s20, 2
        // Predicated region
        $region69: #{tpu_custom_call.1} parent=67 // pred_check
          %p1430 = pneg %p201
        $region70: #{tpu_custom_call.1} parent=67 // pred_check_branch
          %1432 = sbr.rel (%p1430) target = $region72
        $region71: #{tpu_custom_call.1} parent=67 // pred_region
          %s1433 = sand.u32 %s186, 1
          %s1434 = scalar_lea.sflag [#allocation5], %s1433
          %s1435 = sand.u32 %s186, 1
          %s1436 = smul.addr %s1435, 16
          %s1437 = scalar_lea.vmem [#allocation9], %s1436
          %1438 = dma.done %s1434, 256
        $region72: #{tpu_custom_call.1} parent=67 // pred_fallthru
          _
      $region68: #{tpu_custom_call.1} parent=5 // pred_fallthru
        _
    $region6: #{tpu_custom_call.1} parent=1 // loop_footer
      %s24 = sadd.s32 1, %s20
    $region7: #{tpu_custom_call.1} parent=1 // loop_footer_branch
      %19 = sbr.rel target = $region3
    $region8: #{tpu_custom_call.1} parent=1 // loop_exit
      _
    %1439 = vsyncpa [#allocation4], 1
    %s1440 = scalar_lea.sflag [#allocation4], 1
    %1441 = vsyncpa %s1440, 1
    %1442 = vsyncpa [#allocation7], 1
    %1443 = vsyncpa [#allocation5], 1
    %s1444 = scalar_lea.sflag [#allocation5], 1
    %1445 = vsyncpa %s1444, 1

</llo_original>
